<compile_context>
chip_gen: v7x
topology: tpu7x:2x2x1
jax: 0.10.0
libtpu: 0.0.40
codegen_flags: <defaults>
</compile_context>

<pallas_src>
import jax
import jax.numpy as jnp
from jax.experimental import pallas as pl
from jax.experimental.pallas import tpu as pltpu


def net_reg_kernel(
    a_ref, b_ref,          # [tb, d3] f32 activations
    w12_ref,               # [2, d3, d3]   bf16  (reg1 / reg2 weights)
    wr0_ref,               # [2, d3, h0]   bf16  (reg[0] weight, pre-split)
    wr1_ref,               # [h0, h1]      bf16  (reg[3] weight)
    wr2_ref,               # [1, h1]       f32   (reg[6] weight as row vector)
    b12_ref,               # [2, d3]       f32   (reg1 / reg2 biases)
    breg_ref,              # [3, max(h0,h1)] f32 (br0 | br1 | br2, zero padded)
    out_ref,               # [tb, 1] f32
):
    f32 = jnp.float32
    bf16 = jnp.bfloat16
    h0 = wr0_ref.shape[2]
    h1 = wr1_ref.shape[1]

    # A = ReLU(A @ W1 + b1) ; B = ReLU(B @ W2 + b2)   (bf16 MXU, f32 accumulate)
    A = jnp.maximum(
        jnp.dot(a_ref[...].astype(bf16), w12_ref[0], preferred_element_type=f32)
        + b12_ref[0:1, :], 0.0)
    B = jnp.maximum(
        jnp.dot(b_ref[...].astype(bf16), w12_ref[1], preferred_element_type=f32)
        + b12_ref[1:2, :], 0.0)

    # x = cat([A, B], axis=1); x @ Wr0 done as split matmuls (wr0 pre-split at
    # pack time):  cat(A,B) @ Wr0 = A @ Wr0[:d3] + B @ Wr0[d3:]
    h = jnp.dot(A.astype(bf16), wr0_ref[0], preferred_element_type=f32)
    h = h + jnp.dot(B.astype(bf16), wr0_ref[1], preferred_element_type=f32)
    h = jnp.maximum(h + breg_ref[0:1, 0:h0], 0.0)
    # Dropout(0.1) -> identity (eval mode)

    h = jnp.maximum(
        jnp.dot(h.astype(bf16), wr1_ref[...], preferred_element_type=f32)
        + breg_ref[1:2, 0:h1], 0.0)
    # Dropout(0.1) -> identity (eval mode)

    # Final Linear(512 -> 1) as VPU multiply + lane reduction (avoids an N=1
    # MXU matmul that would use 1/128..1/256 of the MXU columns).
    out = jnp.sum(h * wr2_ref[...], axis=-1, keepdims=True) + breg_ref[2:3, 0:1]
    out_ref[...] = out.astype(out_ref.dtype)


def pack_params(params):
    """Cast weights to bf16 and consolidate the 10 parameter arrays into 6."""
    d3 = params["w1"].shape[0]
    h0 = params["wr0"].shape[1]            # 1024
    h1 = params["wr1"].shape[1]            # 512
    bw = max(h0, h1, 1)

    w12 = jnp.stack([params["w1"], params["w2"]]).astype(jnp.bfloat16)
    wr0 = jnp.stack([params["wr0"][:d3], params["wr0"][d3:]]).astype(jnp.bfloat16)
    wr1 = params["wr1"].astype(jnp.bfloat16)
    wr2 = params["wr2"].reshape(1, h1).astype(jnp.float32)   # row vector, stays f32

    b12 = jnp.concatenate([params["b1"], params["b2"]], axis=0).astype(jnp.float32)
    breg = jnp.zeros((3, bw), jnp.float32)
    breg = breg.at[0, :h0].set(params["br0"][0])
    breg = breg.at[1, :h1].set(params["br1"][0])
    breg = breg.at[2, 0].set(params["br2"][0, 0])
    return dict(w12=w12, wr0=wr0, wr1=wr1, wr2=wr2, b12=b12, breg=breg)


def net_reg_forward(A, B, packed, *, block_batch=256):
    """Run the fused net_reg forward pass. `packed` comes from pack_params()."""
    batch, d3 = A.shape
    h0 = packed["wr0"].shape[2]
    h1 = packed["wr1"].shape[1]

    # Batch tiling: single tile for small batches; 256-row tiles (MXU-sized on
    # v6e/v7x) with weight-resident BlockSpecs when the batch is large.
    if batch <= block_batch:
        tb = batch
        pad = 0
    else:
        tb = block_batch
        pad = (-batch) % tb
        if pad:
            A = jnp.pad(A, ((0, pad), (0, 0)))
            B = jnp.pad(B, ((0, pad), (0, 0)))
    pb = batch + pad
    nb = pb // tb

    inputs = (A, B, packed["w12"], packed["wr0"], packed["wr1"],
              packed["wr2"], packed["b12"], packed["breg"])

    flops = 2 * pb * (2 * d3 * d3 + 2 * d3 * h0 + h0 * h1 + h1)
    bytes_accessed = sum(int(x.size) * x.dtype.itemsize for x in inputs) + pb * 4

    out = pl.pallas_call(
        net_reg_kernel,
        out_shape=jax.ShapeDtypeStruct((pb, 1), jnp.float32),
        grid=(nb,),
        in_specs=[
            pl.BlockSpec((tb, d3), lambda i: (i, 0)),            # A tile
            pl.BlockSpec((tb, d3), lambda i: (i, 0)),            # B tile
            pl.BlockSpec(packed["w12"].shape, lambda i: (0, 0, 0)),   # resident
            pl.BlockSpec(packed["wr0"].shape, lambda i: (0, 0, 0)),   # resident
            pl.BlockSpec(packed["wr1"].shape, lambda i: (0, 0)),      # resident
            pl.BlockSpec(packed["wr2"].shape, lambda i: (0, 0)),      # resident
            pl.BlockSpec(packed["b12"].shape, lambda i: (0, 0)),      # resident
            pl.BlockSpec(packed["breg"].shape, lambda i: (0, 0)),     # resident
        ],
        out_specs=pl.BlockSpec((tb, 1), lambda i: (i, 0)),
        compiler_params=pltpu.CompilerParams(
            dimension_semantics=("parallel",)),
        cost_estimate=pl.CostEstimate(
            flops=flops, transcendentals=0, bytes_accessed=bytes_accessed),
    )(*inputs)
    return out[:batch]


def init_params(key, num_filters):
    """Deterministic init mimicking torch.nn.Linear default (uniform +-1/sqrt(fan_in)).
    Weights stored as [in, out] (transposed relative to torch's [out, in])."""
    d3 = num_filters * 3
    d6 = num_filters * 6

    def linear(key, fan_in, fan_out):
        kw, kb = jax.random.split(key)
        bound = 1.0 / jnp.sqrt(fan_in)
        w = jax.random.uniform(kw, (fan_in, fan_out), jnp.float32, -bound, bound)
        b = jax.random.uniform(kb, (1, fan_out), jnp.float32, -bound, bound)
        return w, b

    keys = jax.random.split(key, 5)
    w1, b1 = linear(keys[0], d3, d3)        # reg1
    w2, b2 = linear(keys[1], d3, d3)        # reg2
    wr0, br0 = linear(keys[2], d6, 1024)    # reg[0]
    wr1, br1 = linear(keys[3], 1024, 512)   # reg[3]
    wr2, br2 = linear(keys[4], 512, 1)      # reg[6]
    return dict(w1=w1, b1=b1, w2=w2, b2=b2,
                wr0=wr0, br0=br0, wr1=wr1, br1=br1, wr2=wr2, br2=br2)


def net_reg_reference_bf16(A, B, p):
    """Pure-JAX reference mimicking the kernel's mixed precision (bf16 dots,
    f32 accumulation / elementwise)."""
    bf16, f32 = jnp.bfloat16, jnp.float32

    def mm(x, w):
        return jax.lax.dot(x.astype(bf16), w.astype(bf16),
                           preferred_element_type=f32)

    a = jnp.maximum(mm(A, p["w1"]) + p["b1"], 0.0)
    b = jnp.maximum(mm(B, p["w2"]) + p["b2"], 0.0)
    x = jnp.concatenate([a, b], axis=1)
    h = jnp.maximum(mm(x, p["wr0"]) + p["br0"], 0.0)
    h = jnp.maximum(mm(h, p["wr1"]) + p["br1"], 0.0)
    return (jnp.sum(h * p["wr2"].reshape(1, -1), axis=-1, keepdims=True)
            + p["br2"])


def net_reg_reference_f32(A, B, p):
    """Full-precision reference of the original module (eval mode)."""
    a = jnp.maximum(A @ p["w1"] + p["b1"], 0.0)
    b = jnp.maximum(B @ p["w2"] + p["b2"], 0.0)
    x = jnp.concatenate([a, b], axis=1)
    h = jnp.maximum(x @ p["wr0"] + p["br0"], 0.0)
    h = jnp.maximum(h @ p["wr1"] + p["br1"], 0.0)
    return h @ p["wr2"] + p["br2"]


if __name__ == "__main__":
    num_filters = 32          # -> A/B feature dim = 96, cat dim = 192
    batch = 8

    key = jax.random.PRNGKey(0)
    k_params, k_a, k_b = jax.random.split(key, 3)

    params = init_params(k_params, num_filters)
    packed = pack_params(params)
    A = jax.random.normal(k_a, (batch, num_filters * 3), jnp.float32)
    B = jax.random.normal(k_b, (batch, num_filters * 3), jnp.float32)

    out = net_reg_forward(A, B, packed)
    out = jax.block_until_ready(out)

    ref = net_reg_reference_bf16(A, B, params)
    ref_f32 = net_reg_reference_f32(A, B, params)

    assert out.shape == (batch, 1), out.shape
    assert jnp.allclose(out, ref, atol=1e-3, rtol=1e-3), (out, ref)
    assert jnp.allclose(out, ref_f32, atol=5e-2, rtol=5e-2), (out, ref_f32)

    print("KERNEL_OK")
</pallas_src>

<mosaic_0001>
module attributes {stable_mosaic.version = 11 : i64} {
  func.func @net_reg_kernel(%arg0: i32, %arg1: memref<8x96xf32, #tpu.memory_space<vmem>>, %arg2: memref<8x96xf32, #tpu.memory_space<vmem>>, %arg3: memref<2x96x96xbf16, #tpu.memory_space<vmem>>, %arg4: memref<2x96x1024xbf16, #tpu.memory_space<vmem>>, %arg5: memref<1024x512xbf16, #tpu.memory_space<vmem>>, %arg6: memref<1x512xf32, #tpu.memory_space<vmem>>, %arg7: memref<2x96xf32, #tpu.memory_space<vmem>>, %arg8: memref<3x1024xf32, #tpu.memory_space<vmem>>, %arg9: memref<8x1xf32, #tpu.memory_space<vmem>>) attributes {dimension_semantics = [#tpu.dimension_semantics<parallel>], iteration_bounds = array<i64: 1>, scalar_prefetch = 0 : i64, scratch_operands = 0 : i64, tpu.core_type = #tpu.core_type<tc>, window_params = [{transform_indices = @transform_0, window_bounds = array<i64: 8, 96>}, {transform_indices = @transform_1, window_bounds = array<i64: 8, 96>}, {pipeline_mode = #tpu.pipeline_mode<synchronous>, transform_indices = @transform_2, window_bounds = array<i64: 2, 96, 96>}, {pipeline_mode = #tpu.pipeline_mode<synchronous>, transform_indices = @transform_3, window_bounds = array<i64: 2, 96, 1024>}, {pipeline_mode = #tpu.pipeline_mode<synchronous>, transform_indices = @transform_4, window_bounds = array<i64: 1024, 512>}, {pipeline_mode = #tpu.pipeline_mode<synchronous>, transform_indices = @transform_5, window_bounds = array<i64: 1, 512>}, {pipeline_mode = #tpu.pipeline_mode<synchronous>, transform_indices = @transform_6, window_bounds = array<i64: 2, 96>}, {pipeline_mode = #tpu.pipeline_mode<synchronous>, transform_indices = @transform_7, window_bounds = array<i64: 3, 1024>}, {transform_indices = @transform_8, window_bounds = array<i64: 8, 1>}]} {
    %c0 = arith.constant 0 : index
    %c0_0 = arith.constant 0 : index
    %0 = vector.load %arg1[%c0, %c0_0] : memref<8x96xf32, #tpu.memory_space<vmem>>, vector<8x96xf32>
    %1 = arith.truncf %0 : vector<8x96xf32> to vector<8x96xbf16>
    %c0_1 = arith.constant 0 : index
    %c0_2 = arith.constant 0 : index
    %c0_3 = arith.constant 0 : index
    %2 = vector.load %arg3[%c0_1, %c0_2, %c0_3] : memref<2x96x96xbf16, #tpu.memory_space<vmem>>, vector<1x96x96xbf16>
    %3 = vector.shape_cast %2 : vector<1x96x96xbf16> to vector<96x96xbf16>
    %cst = arith.constant dense<0.000000e+00> : vector<8x96xf32>
    %4 = tpu.matmul %1, %3, %cst {dimension_numbers = #tpu.dot_dimension_numbers<[1], [0], [0], [1], [0, 0, 1, 1], [], []>} : vector<8x96xbf16>, vector<96x96xbf16>, vector<8x96xf32> -> vector<8x96xf32>
    %c0_4 = arith.constant 0 : index
    %c0_5 = arith.constant 0 : index
    %5 = vector.load %arg7[%c0_4, %c0_5] : memref<2x96xf32, #tpu.memory_space<vmem>>, vector<1x96xf32>
    %6 = vector.broadcast %5 : vector<1x96xf32> to vector<8x96xf32>
    %7 = arith.addf %4, %6 : vector<8x96xf32>
    %cst_6 = arith.constant 0.000000e+00 : f32
    %8 = vector.broadcast %cst_6 : f32 to vector<8x96xf32>
    %9 = arith.maximumf %7, %8 : vector<8x96xf32>
    %c0_7 = arith.constant 0 : index
    %c0_8 = arith.constant 0 : index
    %10 = vector.load %arg2[%c0_7, %c0_8] : memref<8x96xf32, #tpu.memory_space<vmem>>, vector<8x96xf32>
    %11 = arith.truncf %10 : vector<8x96xf32> to vector<8x96xbf16>
    %c1 = arith.constant 1 : index
    %c0_9 = arith.constant 0 : index
    %c0_10 = arith.constant 0 : index
    %12 = vector.load %arg3[%c1, %c0_9, %c0_10] : memref<2x96x96xbf16, #tpu.memory_space<vmem>>, vector<1x96x96xbf16>
    %13 = vector.shape_cast %12 : vector<1x96x96xbf16> to vector<96x96xbf16>
    %cst_11 = arith.constant dense<0.000000e+00> : vector<8x96xf32>
    %14 = tpu.matmul %11, %13, %cst_11 {dimension_numbers = #tpu.dot_dimension_numbers<[1], [0], [0], [1], [0, 0, 1, 1], [], []>} : vector<8x96xbf16>, vector<96x96xbf16>, vector<8x96xf32> -> vector<8x96xf32>
    %c1_12 = arith.constant 1 : index
    %c0_13 = arith.constant 0 : index
    %15 = vector.load %arg7[%c1_12, %c0_13] : memref<2x96xf32, #tpu.memory_space<vmem>>, vector<1x96xf32>
    %16 = vector.broadcast %15 : vector<1x96xf32> to vector<8x96xf32>
    %17 = arith.addf %14, %16 : vector<8x96xf32>
    %cst_14 = arith.constant 0.000000e+00 : f32
    %18 = vector.broadcast %cst_14 : f32 to vector<8x96xf32>
    %19 = arith.maximumf %17, %18 : vector<8x96xf32>
    %20 = arith.truncf %9 : vector<8x96xf32> to vector<8x96xbf16>
    %c0_15 = arith.constant 0 : index
    %c0_16 = arith.constant 0 : index
    %c0_17 = arith.constant 0 : index
    %21 = vector.load %arg4[%c0_15, %c0_16, %c0_17] : memref<2x96x1024xbf16, #tpu.memory_space<vmem>>, vector<1x96x1024xbf16>
    %22 = vector.shape_cast %21 : vector<1x96x1024xbf16> to vector<96x1024xbf16>
    %cst_18 = arith.constant dense<0.000000e+00> : vector<8x1024xf32>
    %23 = tpu.matmul %20, %22, %cst_18 {dimension_numbers = #tpu.dot_dimension_numbers<[1], [0], [0], [1], [0, 0, 1, 1], [], []>} : vector<8x96xbf16>, vector<96x1024xbf16>, vector<8x1024xf32> -> vector<8x1024xf32>
    %24 = arith.truncf %19 : vector<8x96xf32> to vector<8x96xbf16>
    %c1_19 = arith.constant 1 : index
    %c0_20 = arith.constant 0 : index
    %c0_21 = arith.constant 0 : index
    %25 = vector.load %arg4[%c1_19, %c0_20, %c0_21] : memref<2x96x1024xbf16, #tpu.memory_space<vmem>>, vector<1x96x1024xbf16>
    %26 = vector.shape_cast %25 : vector<1x96x1024xbf16> to vector<96x1024xbf16>
    %cst_22 = arith.constant dense<0.000000e+00> : vector<8x1024xf32>
    %27 = tpu.matmul %24, %26, %cst_22 {dimension_numbers = #tpu.dot_dimension_numbers<[1], [0], [0], [1], [0, 0, 1, 1], [], []>} : vector<8x96xbf16>, vector<96x1024xbf16>, vector<8x1024xf32> -> vector<8x1024xf32>
    %28 = arith.addf %23, %27 : vector<8x1024xf32>
    %c0_23 = arith.constant 0 : index
    %c0_24 = arith.constant 0 : index
    %29 = vector.load %arg8[%c0_23, %c0_24] : memref<3x1024xf32, #tpu.memory_space<vmem>>, vector<1x1024xf32>
    %30 = vector.broadcast %29 : vector<1x1024xf32> to vector<8x1024xf32>
    %31 = arith.addf %28, %30 : vector<8x1024xf32>
    %cst_25 = arith.constant 0.000000e+00 : f32
    %32 = vector.broadcast %cst_25 : f32 to vector<8x1024xf32>
    %33 = arith.maximumf %31, %32 : vector<8x1024xf32>
    %34 = arith.truncf %33 : vector<8x1024xf32> to vector<8x1024xbf16>
    %c0_26 = arith.constant 0 : index
    %c0_27 = arith.constant 0 : index
    %35 = vector.load %arg5[%c0_26, %c0_27] : memref<1024x512xbf16, #tpu.memory_space<vmem>>, vector<1024x512xbf16>
    %cst_28 = arith.constant dense<0.000000e+00> : vector<8x512xf32>
    %36 = tpu.matmul %34, %35, %cst_28 {dimension_numbers = #tpu.dot_dimension_numbers<[1], [0], [0], [1], [0, 0, 1, 1], [], []>} : vector<8x1024xbf16>, vector<1024x512xbf16>, vector<8x512xf32> -> vector<8x512xf32>
    %c1_29 = arith.constant 1 : index
    %c0_30 = arith.constant 0 : index
    %37 = vector.load %arg8[%c1_29, %c0_30] : memref<3x1024xf32, #tpu.memory_space<vmem>>, vector<1x512xf32>
    %38 = vector.broadcast %37 : vector<1x512xf32> to vector<8x512xf32>
    %39 = arith.addf %36, %38 : vector<8x512xf32>
    %cst_31 = arith.constant 0.000000e+00 : f32
    %40 = vector.broadcast %cst_31 : f32 to vector<8x512xf32>
    %41 = arith.maximumf %39, %40 : vector<8x512xf32>
    %c0_32 = arith.constant 0 : index
    %c0_33 = arith.constant 0 : index
    %42 = vector.load %arg6[%c0_32, %c0_33] : memref<1x512xf32, #tpu.memory_space<vmem>>, vector<1x512xf32>
    %43 = vector.broadcast %42 : vector<1x512xf32> to vector<8x512xf32>
    %44 = arith.mulf %41, %43 : vector<8x512xf32>
    %cst_34 = arith.constant dense<0.000000e+00> : vector<8xf32>
    %45 = vector.multi_reduction <add>, %44, %cst_34 [1] : vector<8x512xf32> to vector<8xf32>
    %46 = vector.shape_cast %45 : vector<8xf32> to vector<8x1xf32>
    %c2 = arith.constant 2 : index
    %c0_35 = arith.constant 0 : index
    %47 = vector.load %arg8[%c2, %c0_35] : memref<3x1024xf32, #tpu.memory_space<vmem>>, vector<1x1xf32>
    %48 = vector.broadcast %47 : vector<1x1xf32> to vector<8x1xf32>
    %49 = arith.addf %46, %48 : vector<8x1xf32>
    %c0_36 = arith.constant 0 : index
    %c0_37 = arith.constant 0 : index
    %50 = vector.load %arg9[%c0_36, %c0_37] : memref<8x1xf32, #tpu.memory_space<vmem>>, vector<8x1xf32>
    tpu.vector_store %arg9[%c0_36, %c0_37], %49 {strides = array<i32>} : memref<8x1xf32, #tpu.memory_space<vmem>>, vector<8x1xf32>,
    return
  }
  func.func @transform_0(%arg0: i32) -> (i32, i32) {
    %c0_i32 = arith.constant 0 : i32
    %c0_i32_0 = arith.constant 0 : i32
    return %arg0, %c0_i32 : i32, i32
  }
  func.func @transform_1(%arg0: i32) -> (i32, i32) {
    %c0_i32 = arith.constant 0 : i32
    %c0_i32_0 = arith.constant 0 : i32
    return %arg0, %c0_i32 : i32, i32
  }
  func.func @transform_2(%arg0: i32) -> (i32, i32, i32) {
    %c0_i32 = arith.constant 0 : i32
    %c0_i32_0 = arith.constant 0 : i32
    %c0_i32_1 = arith.constant 0 : i32
    %c0_i32_2 = arith.constant 0 : i32
    return %c0_i32, %c0_i32_0, %c0_i32_1 : i32, i32, i32
  }
  func.func @transform_3(%arg0: i32) -> (i32, i32, i32) {
    %c0_i32 = arith.constant 0 : i32
    %c0_i32_0 = arith.constant 0 : i32
    %c0_i32_1 = arith.constant 0 : i32
    %c0_i32_2 = arith.constant 0 : i32
    return %c0_i32, %c0_i32_0, %c0_i32_1 : i32, i32, i32
  }
  func.func @transform_4(%arg0: i32) -> (i32, i32) {
    %c0_i32 = arith.constant 0 : i32
    %c0_i32_0 = arith.constant 0 : i32
    %c0_i32_1 = arith.constant 0 : i32
    return %c0_i32, %c0_i32_0 : i32, i32
  }
  func.func @transform_5(%arg0: i32) -> (i32, i32) {
    %c0_i32 = arith.constant 0 : i32
    %c0_i32_0 = arith.constant 0 : i32
    %c0_i32_1 = arith.constant 0 : i32
    return %c0_i32, %c0_i32_0 : i32, i32
  }
  func.func @transform_6(%arg0: i32) -> (i32, i32) {
    %c0_i32 = arith.constant 0 : i32
    %c0_i32_0 = arith.constant 0 : i32
    %c0_i32_1 = arith.constant 0 : i32
    return %c0_i32, %c0_i32_0 : i32, i32
  }
  func.func @transform_7(%arg0: i32) -> (i32, i32) {
    %c0_i32 = arith.constant 0 : i32
    %c0_i32_0 = arith.constant 0 : i32
    %c0_i32_1 = arith.constant 0 : i32
    return %c0_i32, %c0_i32_0 : i32, i32
  }
  func.func @transform_8(%arg0: i32) -> (i32, i32) {
    %c0_i32 = arith.constant 0 : i32
    %c0_i32_0 = arith.constant 0 : i32
    return %arg0, %c0_i32 : i32, i32
  }
}

</mosaic_0001>

<llo_original>
// kernel: tpu_custom_call.1
$region0: #{tpu_custom_call.1}
  #allocation0 [shape = 'u32[]', space=smem, size = 0x4, offset = 0x4, fixed_abs, tag = 'smem constant byte address 0x4 - core index']
  #allocation1 [shape = 'u32[144,128]{1,0:T(1,128)}', space=vmem, size = 0x12000, scoped, tag = 'internal scratch']
  %s0 = inlined_call_operand.hbm [shape: f32[8,96], index: 0, kind: input, shape index: {}]
  %s1 = inlined_call_operand.hbm [shape: f32[8,96], index: 1, kind: input, shape index: {}]
  %s2 = inlined_call_operand.hbm [shape: bf16[2,96,96], index: 2, kind: input, shape index: {}]
  %s3 = inlined_call_operand.hbm [shape: bf16[2,96,1024], index: 3, kind: input, shape index: {}]
  %s4 = inlined_call_operand.hbm [shape: bf16[1024,512], index: 4, kind: input, shape index: {}]
  %s5 = inlined_call_operand.vmem [shape: f32[1,512], index: 5, kind: input, shape index: {}]
  %s6 = inlined_call_operand.vmem [shape: f32[2,96], index: 6, kind: input, shape index: {}]
  %s7 = inlined_call_operand.hbm [shape: f32[3,1024], index: 7, kind: input, shape index: {}]
  %s8 = inlined_call_operand.vmem [shape: f32[8,1], index: 8, kind: output, shape index: {}]
  %s9 = sld [smem:[#allocation0]]
  $region66: #{tpu_custom_call.1} parent=0
    _
  %s11 = ssub.s32 1, %s9
  %s12 = scalar_select 0, %s11, %s9
  $region1: #{tpu_custom_call.1} parent=0
    #allocation2 [shape = 'u8[4096]{0}', space=vmem, size = 0x1000, scoped, tag = 'input window, operand 0, single buffered']
    #allocation3 [shape = 's32[1]{0}', space=sflag, size = 0x4, scoped, tag = 'scoped memory for tpu_custom_call.1']
    #allocation4 [shape = 'u8[4096]{0}', space=vmem, size = 0x1000, scoped, tag = 'input window, operand 1, single buffered']
    #allocation5 [shape = 's32[1]{0}', space=sflag, size = 0x4, scoped, tag = 'scoped memory for tpu_custom_call.1']
    #allocation6 [shape = 'u8[49152]{0}', space=vmem, size = 0xc000, scoped, tag = 'input window, operand 2, single buffered']
    #allocation7 [shape = 'u8[393216]{0}', space=vmem, size = 0x60000, scoped, tag = 'input window, operand 3, single buffered']
    #allocation8 [shape = 's32[1]{0}', space=sflag, size = 0x4, scoped, tag = 'scoped memory for tpu_custom_call.1']
    #allocation9 [shape = 'u8[1048576]{0}', space=vmem, size = 0x100000, scoped, tag = 'input window, operand 4, single buffered']
    #allocation10 [shape = 'u8[16384]{0}', space=vmem, size = 0x4000, scoped, tag = 'input window, operand 7, single buffered']
    #allocation11 [shape = 's32[1]{0}', space=sflag, size = 0x4, scoped, tag = 'scoped memory for tpu_custom_call.1']
    %13 = vsyncpa [#allocation3], 0
    %14 = vsyncpa [#allocation5], 0
    %15 = vsyncpa [#allocation8], 0
    %16 = vsyncpa [#allocation11], 0
    // Predicated region
    $region2: #{tpu_custom_call.1} parent=1 // pred_check
      _
    $region3: #{tpu_custom_call.1} parent=1 // pred_check_branch
      %18 = sbr.rel (0) target = $region5
    $region4: #{tpu_custom_call.1} parent=1 // pred_region
      %s20 = ssub.s32 128, 128
      %21 = vsyncadd [#allocation3], %s20
      %s23 = sshll.u32 [#allocation2], 4
      %s24 = int_to_ptr.vmem [resolvable:$true] %s23
      %26 = dma.hbm_to_vmem [thread:$0]  %s0, 128, %s24, [#allocation3]
    $region5: #{tpu_custom_call.1} parent=1 // pred_fallthru
      _
    // Predicated region
    $region6: #{tpu_custom_call.1} parent=1 // pred_check
      _
    $region7: #{tpu_custom_call.1} parent=1 // pred_check_branch
      %28 = sbr.rel (0) target = $region9
    $region8: #{tpu_custom_call.1} parent=1 // pred_region
      %s30 = ssub.s32 128, 128
      %31 = vsyncadd [#allocation5], %s30
      %s33 = sshll.u32 [#allocation4], 4
      %s34 = int_to_ptr.vmem [resolvable:$true] %s33
      %36 = dma.hbm_to_vmem [thread:$0]  %s1, 128, %s34, [#allocation5]
    $region9: #{tpu_custom_call.1} parent=1 // pred_fallthru
      _
    // Predicated region
    $region10: #{tpu_custom_call.1} parent=1 // pred_check
      _
    $region11: #{tpu_custom_call.1} parent=1 // pred_check_branch
      %38 = sbr.rel (0) target = $region13
    $region12: #{tpu_custom_call.1} parent=1 // pred_region
      %s40 = ssub.s32 1536, 1536
      %41 = vsyncadd [#allocation5], %s40
      %s42 = sshll.u32 [#allocation6], 4
      %s43 = int_to_ptr.vmem [resolvable:$true] %s42
      %48 = dma.hbm_to_vmem [thread:$0]  %s2, 1536, %s43, [#allocation5], 64, 64, 4
    $region13: #{tpu_custom_call.1} parent=1 // pred_fallthru
      _
    // Predicated region
    $region14: #{tpu_custom_call.1} parent=1 // pred_check
      _
    $region15: #{tpu_custom_call.1} parent=1 // pred_check_branch
      %50 = sbr.rel (0) target = $region17
    $region16: #{tpu_custom_call.1} parent=1 // pred_region
      %s52 = ssub.s32 12288, 12288
      %53 = vsyncadd [#allocation8], %s52
      %s54 = sshll.u32 [#allocation7], 4
      %s55 = int_to_ptr.vmem [resolvable:$true] %s54
      %60 = dma.hbm_to_vmem [thread:$0]  %s3, 12288, %s55, [#allocation8], 512, 512, 32
    $region17: #{tpu_custom_call.1} parent=1 // pred_fallthru
      _
    // Predicated region
    $region18: #{tpu_custom_call.1} parent=1 // pred_check
      _
    $region19: #{tpu_custom_call.1} parent=1 // pred_check_branch
      %62 = sbr.rel (0) target = $region21
    $region20: #{tpu_custom_call.1} parent=1 // pred_region
      %s64 = ssub.s32 32768, 32768
      %65 = vsyncadd [#allocation8], %s64
      %s66 = sshll.u32 [#allocation9], 4
      %s67 = int_to_ptr.vmem [resolvable:$true] %s66
      %72 = dma.hbm_to_vmem [thread:$0]  %s4, 32768, %s67, [#allocation8], 256, 256, 16
    $region21: #{tpu_custom_call.1} parent=1 // pred_fallthru
      _
    // Predicated region
    $region22: #{tpu_custom_call.1} parent=1 // pred_check
      _
    $region23: #{tpu_custom_call.1} parent=1 // pred_check_branch
      %74 = sbr.rel (0) target = $region25
    $region24: #{tpu_custom_call.1} parent=1 // pred_region
      _
    $region25: #{tpu_custom_call.1} parent=1 // pred_fallthru
      _
    // Predicated region
    $region26: #{tpu_custom_call.1} parent=1 // pred_check
      _
    $region27: #{tpu_custom_call.1} parent=1 // pred_check_branch
      %76 = sbr.rel (0) target = $region29
    $region28: #{tpu_custom_call.1} parent=1 // pred_region
      _
    $region29: #{tpu_custom_call.1} parent=1 // pred_fallthru
      _
    // Predicated region
    $region30: #{tpu_custom_call.1} parent=1 // pred_check
      _
    $region31: #{tpu_custom_call.1} parent=1 // pred_check_branch
      %78 = sbr.rel (0) target = $region33
    $region32: #{tpu_custom_call.1} parent=1 // pred_region
      %s80 = ssub.s32 512, 512
      %81 = vsyncadd [#allocation11], %s80
      %s83 = sshll.u32 [#allocation10], 4
      %s84 = int_to_ptr.vmem [resolvable:$true] %s83
      %86 = dma.hbm_to_vmem [thread:$0]  %s7, 512, %s84, [#allocation11]
    $region33: #{tpu_custom_call.1} parent=1 // pred_fallthru
      _
    // Predicated region
    $region34: #{tpu_custom_call.1} parent=1 // pred_check
      _
    $region35: #{tpu_custom_call.1} parent=1 // pred_check_branch
      %88 = sbr.rel (0) target = $region37
    $region36: #{tpu_custom_call.1} parent=1 // pred_region
      %89 = dma.done [#allocation3], 128
    $region37: #{tpu_custom_call.1} parent=1 // pred_fallthru
      _
    // Predicated region
    $region38: #{tpu_custom_call.1} parent=1 // pred_check
      _
    $region39: #{tpu_custom_call.1} parent=1 // pred_check_branch
      %91 = sbr.rel (0) target = $region41
    $region40: #{tpu_custom_call.1} parent=1 // pred_region
      %92 = dma.done [#allocation5], 128
    $region41: #{tpu_custom_call.1} parent=1 // pred_fallthru
      _
    // Predicated region
    $region42: #{tpu_custom_call.1} parent=1 // pred_check
      _
    $region43: #{tpu_custom_call.1} parent=1 // pred_check_branch
      %94 = sbr.rel (0) target = $region45
    $region44: #{tpu_custom_call.1} parent=1 // pred_region
      %95 = dma.done [#allocation5], 1536
    $region45: #{tpu_custom_call.1} parent=1 // pred_fallthru
      _
    // Predicated region
    $region46: #{tpu_custom_call.1} parent=1 // pred_check
      _
    $region47: #{tpu_custom_call.1} parent=1 // pred_check_branch
      %97 = sbr.rel (0) target = $region49
    $region48: #{tpu_custom_call.1} parent=1 // pred_region
      %98 = dma.done [#allocation8], 12288
    $region49: #{tpu_custom_call.1} parent=1 // pred_fallthru
      _
    // Predicated region
    $region50: #{tpu_custom_call.1} parent=1 // pred_check
      _
    $region51: #{tpu_custom_call.1} parent=1 // pred_check_branch
      %100 = sbr.rel (0) target = $region53
    $region52: #{tpu_custom_call.1} parent=1 // pred_region
      %101 = dma.done [#allocation8], 32768
    $region53: #{tpu_custom_call.1} parent=1 // pred_fallthru
      _
    // Predicated region
    $region54: #{tpu_custom_call.1} parent=1 // pred_check
      _
    $region55: #{tpu_custom_call.1} parent=1 // pred_check_branch
      %103 = sbr.rel (0) target = $region57
    $region56: #{tpu_custom_call.1} parent=1 // pred_region
      %104 = dma.done [#allocation11], 512
    $region57: #{tpu_custom_call.1} parent=1 // pred_fallthru
      _
    %v106 = vld [vmem:[#allocation2] sm:$0xff]
    %v107 = vpack.c.bf16 %v106, %v106
    %v108 = vld [vmem:[#allocation6] sm:$0xf]
    %v109 = vld [vmem:[#allocation6 + $0x4] sm:$0xf]
    %v110 = vld [vmem:[#allocation6 + $0x8] sm:$0xf]
    %v111 = vld [vmem:[#allocation6 + $0xc] sm:$0xf]
    %v112 = vld [vmem:[#allocation6 + $0x10] sm:$0xf]
    %v113 = vld [vmem:[#allocation6 + $0x14] sm:$0xf]
    %v114 = vld [vmem:[#allocation6 + $0x18] sm:$0xf]
    %v115 = vld [vmem:[#allocation6 + $0x1c] sm:$0xf]
    %v116 = vld [vmem:[#allocation6 + $0x20] sm:$0xf]
    %v117 = vld [vmem:[#allocation6 + $0x24] sm:$0xf]
    %v118 = vld [vmem:[#allocation6 + $0x28] sm:$0xf]
    %v119 = vld [vmem:[#allocation6 + $0x2c] sm:$0xf]
    %v120 = vld [vmem:[%s6] sm:$0x1]
    %v121 = vlaneseq
    %v122 = vshrl.u32 %v121, 7
    %v123 = vsub.s32 0, %v122
    %v124 = vrot.slane %v120, %v123
    %v137 = vunpack.c.l.b16 %v108
    %v138 = vunpack.c.l.b16 %v109
    %v139 = vunpack.c.l.b16 %v110
    %v140 = vunpack.c.l.b16 %v111
    %v141 = vunpack.c.l.b16 %v112
    %v142 = vunpack.c.l.b16 %v113
    %v143 = vunpack.c.l.b16 %v114
    %v144 = vunpack.c.l.b16 %v115
    %v145 = vunpack.c.l.b16 %v116
    %v146 = vunpack.c.l.b16 %v117
    %v147 = vunpack.c.l.b16 %v118
    %v148 = vunpack.c.l.b16 %v119
    %v149 = vpack.c.b16 %v138, %v137
    %v150 = vpack.c.b16 %v140, %v139
    %v151 = vpack.c.b16 %v142, %v141
    %v152 = vpack.c.b16 %v144, %v143
    %v153 = vpack.c.b16 %v146, %v145
    %v154 = vpack.c.b16 %v148, %v147
    %vm161 = vcmask 785408
    %v163 = vsel %vm161, %v107, 0
    %165 = vmatprep.subr.bf16.mxu0 0
    %166 = vmatpush1.bf16.msra.mxu0 %v149
    %167 = vmatprep.subr.bf16.mxu0 0
    %168 = vmatpush1.bf16.msra.mxu0 %v150
    %169 = vmatprep.subr.bf16.mxu0 0
    %170 = vmatpush1.bf16.msra.mxu0 %v151
    %171 = vmatprep.subr.bf16.mxu0 0
    %172 = vmatpush1.bf16.msra.mxu0 %v152
    %173 = vmatprep.subr.bf16.mxu0 0
    %174 = vmatpush1.bf16.msra.mxu0 %v153
    %175 = vmatprep.subr.bf16.mxu0 0
    %176 = vmatpush1.bf16.msra.mxu0 %v154
    %177 = vmatprep.subr.bf16.mxu0 0
    %178 = vmatpush1.bf16.msra.mxu0 0
    %179 = vmatprep.subr.bf16.mxu0 0
    %180 = vmatpush1.bf16.msra.mxu0 0
    %181 = vmatprep.subr.bf16.mxu0 0
    %182 = vmatpush1.bf16.msra.mxu0 0
    %183 = vmatprep.subr.bf16.mxu0 0
    %184 = vmatpush1.bf16.msra.mxu0 0
    %185 = vmatprep.subr.bf16.mxu0 0
    %186 = vmatpush1.bf16.msra.mxu0 0
    %187 = vmatprep.subr.bf16.mxu0 0
    %188 = vmatpush1.bf16.msra.mxu0 0
    %189 = vmatprep.subr.bf16.mxu0 0
    %190 = vmatpush1.bf16.msra.mxu0 0
    %191 = vmatprep.subr.bf16.mxu0 0
    %192 = vmatpush1.bf16.msra.mxu0 0
    %193 = vmatprep.subr.bf16.mxu0 0
    %194 = vmatpush1.bf16.msra.mxu0 0
    %195 = vmatprep.subr.bf16.mxu0 0
    %196 = vmatpush1.bf16.msra.mxu0 0
    %197 = vmatprep.mubr.bf16.mxu0 0
    %198 = vmatmul.mubr.bf16.gmra.mrb[0].mxu0 %v163
    %v199 = vpop.f32.mrb[0].mxu0
    %v200 = vadd.f32 %v124, %v199
    %v201 = vpop.f32.mrb[0].mxu0
    %v202 = vpop.f32.mrb[0].mxu0
    %v203 = vpop.f32.mrb[0].mxu0
    %204 = vdwg.mxu0
    %v205 = vmax.f32 %v200, 0.0
    %v206 = vld [vmem:[#allocation4] sm:$0xff]
    %v207 = vpack.c.bf16 %v206, %v206
    %s208 = scalar_lea.vmem [#allocation6], 48
    %v209 = vld [vmem:[%s208] sm:$0xf]
    %v210 = vld [vmem:[%s208 + $0x4] sm:$0xf]
    %v211 = vld [vmem:[%s208 + $0x8] sm:$0xf]
    %v212 = vld [vmem:[%s208 + $0xc] sm:$0xf]
    %v213 = vld [vmem:[%s208 + $0x10] sm:$0xf]
    %v214 = vld [vmem:[%s208 + $0x14] sm:$0xf]
    %v215 = vld [vmem:[%s208 + $0x18] sm:$0xf]
    %v216 = vld [vmem:[%s208 + $0x1c] sm:$0xf]
    %v217 = vld [vmem:[%s208 + $0x20] sm:$0xf]
    %v218 = vld [vmem:[%s208 + $0x24] sm:$0xf]
    %v219 = vld [vmem:[%s208 + $0x28] sm:$0xf]
    %v220 = vld [vmem:[%s208 + $0x2c] sm:$0xf]
    %v221 = vld [vmem:[%s6 + $0x1] sm:$0x1]
    %v222 = vlaneseq
    %v223 = vshrl.u32 %v222, 7
    %v224 = vsub.s32 0, %v223
    %v225 = vrot.slane %v221, %v224
    %v238 = vunpack.c.l.b16 %v209
    %v239 = vunpack.c.l.b16 %v210
    %v240 = vunpack.c.l.b16 %v211
    %v241 = vunpack.c.l.b16 %v212
    %v242 = vunpack.c.l.b16 %v213
    %v243 = vunpack.c.l.b16 %v214
    %v244 = vunpack.c.l.b16 %v215
    %v245 = vunpack.c.l.b16 %v216
    %v246 = vunpack.c.l.b16 %v217
    %v247 = vunpack.c.l.b16 %v218
    %v248 = vunpack.c.l.b16 %v219
    %v249 = vunpack.c.l.b16 %v220
    %v250 = vpack.c.b16 %v239, %v238
    %v251 = vpack.c.b16 %v241, %v240
    %v252 = vpack.c.b16 %v243, %v242
    %v253 = vpack.c.b16 %v245, %v244
    %v254 = vpack.c.b16 %v247, %v246
    %v255 = vpack.c.b16 %v249, %v248
    %v263 = vsel %vm161, %v207, 0
    %265 = vmatprep.subr.bf16.mxu0 0
    %266 = vmatpush1.bf16.msra.mxu0 %v250
    %267 = vmatprep.subr.bf16.mxu0 0
    %268 = vmatpush1.bf16.msra.mxu0 %v251
    %269 = vmatprep.subr.bf16.mxu0 0
    %270 = vmatpush1.bf16.msra.mxu0 %v252
    %271 = vmatprep.subr.bf16.mxu0 0
    %272 = vmatpush1.bf16.msra.mxu0 %v253
    %273 = vmatprep.subr.bf16.mxu0 0
    %274 = vmatpush1.bf16.msra.mxu0 %v254
    %275 = vmatprep.subr.bf16.mxu0 0
    %276 = vmatpush1.bf16.msra.mxu0 %v255
    %277 = vmatprep.subr.bf16.mxu0 0
    %278 = vmatpush1.bf16.msra.mxu0 0
    %279 = vmatprep.subr.bf16.mxu0 0
    %280 = vmatpush1.bf16.msra.mxu0 0
    %281 = vmatprep.subr.bf16.mxu0 0
    %282 = vmatpush1.bf16.msra.mxu0 0
    %283 = vmatprep.subr.bf16.mxu0 0
    %284 = vmatpush1.bf16.msra.mxu0 0
    %285 = vmatprep.subr.bf16.mxu0 0
    %286 = vmatpush1.bf16.msra.mxu0 0
    %287 = vmatprep.subr.bf16.mxu0 0
    %288 = vmatpush1.bf16.msra.mxu0 0
    %289 = vmatprep.subr.bf16.mxu0 0
    %290 = vmatpush1.bf16.msra.mxu0 0
    %291 = vmatprep.subr.bf16.mxu0 0
    %292 = vmatpush1.bf16.msra.mxu0 0
    %293 = vmatprep.subr.bf16.mxu0 0
    %294 = vmatpush1.bf16.msra.mxu0 0
    %295 = vmatprep.subr.bf16.mxu0 0
    %296 = vmatpush1.bf16.msra.mxu0 0
    %297 = vmatprep.mubr.bf16.mxu0 0
    %298 = vmatmul.mubr.bf16.gmra.mrb[0].mxu0 %v263
    %v299 = vpop.f32.mrb[0].mxu0
    %v300 = vadd.f32 %v225, %v299
    %v301 = vpop.f32.mrb[0].mxu0
    %v302 = vpop.f32.mrb[0].mxu0
    %v303 = vpop.f32.mrb[0].mxu0
    %304 = vdwg.mxu0
    %v305 = vmax.f32 %v300, 0.0
    %v306 = vpack.c.bf16 %v205, %v205
    %v307 = vld [vmem:[#allocation7] sm:$0xff]
    %v308 = vld [vmem:[#allocation7 + $0x8] sm:$0xff]
    %v309 = vld [vmem:[#allocation7 + $0x10] sm:$0xff]
    %v310 = vld [vmem:[#allocation7 + $0x18] sm:$0xff]
    %v311 = vld [vmem:[#allocation7 + $0x20] sm:$0xff]
    %v312 = vld [vmem:[#allocation7 + $0x28] sm:$0xff]
    %v313 = vld [vmem:[#allocation7 + $0x30] sm:$0xff]
    %v314 = vld [vmem:[#allocation7 + $0x38] sm:$0xff]
    %v315 = vld [vmem:[#allocation7 + $0x40] sm:$0xff]
    %v316 = vld [vmem:[#allocation7 + $0x48] sm:$0xff]
    %v317 = vld [vmem:[#allocation7 + $0x50] sm:$0xff]
    %v318 = vld [vmem:[#allocation7 + $0x58] sm:$0xff]
    %v319 = vld [vmem:[#allocation7 + $0x60] sm:$0xff]
    %v320 = vld [vmem:[#allocation7 + $0x68] sm:$0xff]
    %v321 = vld [vmem:[#allocation7 + $0x70] sm:$0xff]
    %v322 = vld [vmem:[#allocation7 + $0x78] sm:$0xff]
    %v323 = vld [vmem:[#allocation7 + $0x80] sm:$0xff]
    %v324 = vld [vmem:[#allocation7 + $0x88] sm:$0xff]
    %v325 = vld [vmem:[#allocation7 + $0x90] sm:$0xff]
    %v326 = vld [vmem:[#allocation7 + $0x98] sm:$0xff]
    %v327 = vld [vmem:[#allocation7 + $0xa0] sm:$0xff]
    %v328 = vld [vmem:[#allocation7 + $0xa8] sm:$0xff]
    %v329 = vld [vmem:[#allocation7 + $0xb0] sm:$0xff]
    %v330 = vld [vmem:[#allocation7 + $0xb8] sm:$0xff]
    %v331 = vld [vmem:[#allocation7 + $0xc0] sm:$0xff]
    %v332 = vld [vmem:[#allocation7 + $0xc8] sm:$0xff]
    %v333 = vld [vmem:[#allocation7 + $0xd0] sm:$0xff]
    %v334 = vld [vmem:[#allocation7 + $0xd8] sm:$0xff]
    %v335 = vld [vmem:[#allocation7 + $0xe0] sm:$0xff]
    %v336 = vld [vmem:[#allocation7 + $0xe8] sm:$0xff]
    %v337 = vld [vmem:[#allocation7 + $0xf0] sm:$0xff]
    %v338 = vld [vmem:[#allocation7 + $0xf8] sm:$0xff]
    %v339 = vld [vmem:[#allocation7 + $0x100] sm:$0xff]
    %v340 = vld [vmem:[#allocation7 + $0x108] sm:$0xff]
    %v341 = vld [vmem:[#allocation7 + $0x110] sm:$0xff]
    %v342 = vld [vmem:[#allocation7 + $0x118] sm:$0xff]
    %v343 = vld [vmem:[#allocation7 + $0x120] sm:$0xff]
    %v344 = vld [vmem:[#allocation7 + $0x128] sm:$0xff]
    %v345 = vld [vmem:[#allocation7 + $0x130] sm:$0xff]
    %v346 = vld [vmem:[#allocation7 + $0x138] sm:$0xff]
    %v347 = vld [vmem:[#allocation7 + $0x140] sm:$0xff]
    %v348 = vld [vmem:[#allocation7 + $0x148] sm:$0xff]
    %v349 = vld [vmem:[#allocation7 + $0x150] sm:$0xff]
    %v350 = vld [vmem:[#allocation7 + $0x158] sm:$0xff]
    %v351 = vld [vmem:[#allocation7 + $0x160] sm:$0xff]
    %v352 = vld [vmem:[#allocation7 + $0x168] sm:$0xff]
    %v353 = vld [vmem:[#allocation7 + $0x170] sm:$0xff]
    %v354 = vld [vmem:[#allocation7 + $0x178] sm:$0xff]
    %v355 = vpack.c.bf16 %v305, %v305
    %s356 = scalar_lea.vmem [#allocation7], 384
    %v357 = vld [vmem:[%s356] sm:$0xff]
    %v358 = vld [vmem:[%s356 + $0x8] sm:$0xff]
    %v359 = vld [vmem:[%s356 + $0x10] sm:$0xff]
    %v360 = vld [vmem:[%s356 + $0x18] sm:$0xff]
    %v361 = vld [vmem:[%s356 + $0x20] sm:$0xff]
    %v362 = vld [vmem:[%s356 + $0x28] sm:$0xff]
    %v363 = vld [vmem:[%s356 + $0x30] sm:$0xff]
    %v364 = vld [vmem:[%s356 + $0x38] sm:$0xff]
    %v365 = vld [vmem:[%s356 + $0x40] sm:$0xff]
    %v366 = vld [vmem:[%s356 + $0x48] sm:$0xff]
    %v367 = vld [vmem:[%s356 + $0x50] sm:$0xff]
    %v368 = vld [vmem:[%s356 + $0x58] sm:$0xff]
    %v369 = vld [vmem:[%s356 + $0x60] sm:$0xff]
    %v370 = vld [vmem:[%s356 + $0x68] sm:$0xff]
    %v371 = vld [vmem:[%s356 + $0x70] sm:$0xff]
    %v372 = vld [vmem:[%s356 + $0x78] sm:$0xff]
    %v373 = vld [vmem:[%s356 + $0x80] sm:$0xff]
    %v374 = vld [vmem:[%s356 + $0x88] sm:$0xff]
    %v375 = vld [vmem:[%s356 + $0x90] sm:$0xff]
    %v376 = vld [vmem:[%s356 + $0x98] sm:$0xff]
    %v377 = vld [vmem:[%s356 + $0xa0] sm:$0xff]
    %v378 = vld [vmem:[%s356 + $0xa8] sm:$0xff]
    %v379 = vld [vmem:[%s356 + $0xb0] sm:$0xff]
    %v380 = vld [vmem:[%s356 + $0xb8] sm:$0xff]
    %v381 = vld [vmem:[%s356 + $0xc0] sm:$0xff]
    %v382 = vld [vmem:[%s356 + $0xc8] sm:$0xff]
    %v383 = vld [vmem:[%s356 + $0xd0] sm:$0xff]
    %v384 = vld [vmem:[%s356 + $0xd8] sm:$0xff]
    %v385 = vld [vmem:[%s356 + $0xe0] sm:$0xff]
    %v386 = vld [vmem:[%s356 + $0xe8] sm:$0xff]
    %v387 = vld [vmem:[%s356 + $0xf0] sm:$0xff]
    %v388 = vld [vmem:[%s356 + $0xf8] sm:$0xff]
    %v389 = vld [vmem:[%s356 + $0x100] sm:$0xff]
    %v390 = vld [vmem:[%s356 + $0x108] sm:$0xff]
    %v391 = vld [vmem:[%s356 + $0x110] sm:$0xff]
    %v392 = vld [vmem:[%s356 + $0x118] sm:$0xff]
    %v393 = vld [vmem:[%s356 + $0x120] sm:$0xff]
    %v394 = vld [vmem:[%s356 + $0x128] sm:$0xff]
    %v395 = vld [vmem:[%s356 + $0x130] sm:$0xff]
    %v396 = vld [vmem:[%s356 + $0x138] sm:$0xff]
    %v397 = vld [vmem:[%s356 + $0x140] sm:$0xff]
    %v398 = vld [vmem:[%s356 + $0x148] sm:$0xff]
    %v399 = vld [vmem:[%s356 + $0x150] sm:$0xff]
    %v400 = vld [vmem:[%s356 + $0x158] sm:$0xff]
    %v401 = vld [vmem:[%s356 + $0x160] sm:$0xff]
    %v402 = vld [vmem:[%s356 + $0x168] sm:$0xff]
    %v403 = vld [vmem:[%s356 + $0x170] sm:$0xff]
    %v404 = vld [vmem:[%s356 + $0x178] sm:$0xff]
    %v453 = vunpack.c.l.b16 %v357
    %v454 = vunpack.c.h.b16 %v357
    %v455 = vunpack.c.l.b16 %v358
    %v456 = vunpack.c.h.b16 %v358
    %v457 = vunpack.c.l.b16 %v359
    %v458 = vunpack.c.h.b16 %v359
    %v459 = vunpack.c.l.b16 %v360
    %v460 = vunpack.c.h.b16 %v360
    %v461 = vunpack.c.l.b16 %v361
    %v462 = vunpack.c.h.b16 %v361
    %v463 = vunpack.c.l.b16 %v362
    %v464 = vunpack.c.h.b16 %v362
    %v465 = vunpack.c.l.b16 %v363
    %v466 = vunpack.c.h.b16 %v363
    %v467 = vunpack.c.l.b16 %v364
    %v468 = vunpack.c.h.b16 %v364
    %v469 = vunpack.c.l.b16 %v365
    %v470 = vunpack.c.h.b16 %v365
    %v471 = vunpack.c.l.b16 %v366
    %v472 = vunpack.c.h.b16 %v366
    %v473 = vunpack.c.l.b16 %v367
    %v474 = vunpack.c.h.b16 %v367
    %v475 = vunpack.c.l.b16 %v368
    %v476 = vunpack.c.h.b16 %v368
    %v477 = vunpack.c.l.b16 %v369
    %v478 = vunpack.c.h.b16 %v369
    %v479 = vunpack.c.l.b16 %v370
    %v480 = vunpack.c.h.b16 %v370
    %v481 = vunpack.c.l.b16 %v371
    %v482 = vunpack.c.h.b16 %v371
    %v483 = vunpack.c.l.b16 %v372
    %v484 = vunpack.c.h.b16 %v372
    %v485 = vunpack.c.l.b16 %v373
    %v486 = vunpack.c.h.b16 %v373
    %v487 = vunpack.c.l.b16 %v374
    %v488 = vunpack.c.h.b16 %v374
    %v489 = vunpack.c.l.b16 %v375
    %v490 = vunpack.c.h.b16 %v375
    %v491 = vunpack.c.l.b16 %v376
    %v492 = vunpack.c.h.b16 %v376
    %v493 = vunpack.c.l.b16 %v377
    %v494 = vunpack.c.h.b16 %v377
    %v495 = vunpack.c.l.b16 %v378
    %v496 = vunpack.c.h.b16 %v378
    %v497 = vunpack.c.l.b16 %v379
    %v498 = vunpack.c.h.b16 %v379
    %v499 = vunpack.c.l.b16 %v380
    %v500 = vunpack.c.h.b16 %v380
    %v501 = vunpack.c.l.b16 %v381
    %v502 = vunpack.c.h.b16 %v381
    %v503 = vunpack.c.l.b16 %v382
    %v504 = vunpack.c.h.b16 %v382
    %v505 = vunpack.c.l.b16 %v383
    %v506 = vunpack.c.h.b16 %v383
    %v507 = vunpack.c.l.b16 %v384
    %v508 = vunpack.c.h.b16 %v384
    %v509 = vunpack.c.l.b16 %v385
    %v510 = vunpack.c.h.b16 %v385
    %v511 = vunpack.c.l.b16 %v386
    %v512 = vunpack.c.h.b16 %v386
    %v513 = vunpack.c.l.b16 %v387
    %v514 = vunpack.c.h.b16 %v387
    %v515 = vunpack.c.l.b16 %v388
    %v516 = vunpack.c.h.b16 %v388
    %v517 = vunpack.c.l.b16 %v389
    %v518 = vunpack.c.h.b16 %v389
    %v519 = vunpack.c.l.b16 %v390
    %v520 = vunpack.c.h.b16 %v390
    %v521 = vunpack.c.l.b16 %v391
    %v522 = vunpack.c.h.b16 %v391
    %v523 = vunpack.c.l.b16 %v392
    %v524 = vunpack.c.h.b16 %v392
    %v525 = vunpack.c.l.b16 %v393
    %v526 = vunpack.c.h.b16 %v393
    %v527 = vunpack.c.l.b16 %v394
    %v528 = vunpack.c.h.b16 %v394
    %v529 = vunpack.c.l.b16 %v395
    %v530 = vunpack.c.h.b16 %v395
    %v531 = vunpack.c.l.b16 %v396
    %v532 = vunpack.c.h.b16 %v396
    %v533 = vunpack.c.l.b16 %v397
    %v534 = vunpack.c.h.b16 %v397
    %v535 = vunpack.c.l.b16 %v398
    %v536 = vunpack.c.h.b16 %v398
    %v537 = vunpack.c.l.b16 %v399
    %v538 = vunpack.c.h.b16 %v399
    %v539 = vunpack.c.l.b16 %v400
    %v540 = vunpack.c.h.b16 %v400
    %v541 = vunpack.c.l.b16 %v401
    %v542 = vunpack.c.h.b16 %v401
    %v543 = vunpack.c.l.b16 %v402
    %v544 = vunpack.c.h.b16 %v402
    %v545 = vunpack.c.l.b16 %v403
    %v546 = vunpack.c.h.b16 %v403
    %v547 = vunpack.c.l.b16 %v404
    %v548 = vunpack.c.h.b16 %v404
    %v549 = vpack.c.b16 %v461, %v453
    %v550 = vpack.c.b16 %v462, %v454
    %v551 = vpack.c.b16 %v463, %v455
    %v552 = vpack.c.b16 %v464, %v456
    %v553 = vpack.c.b16 %v465, %v457
    %v554 = vpack.c.b16 %v466, %v458
    %v555 = vpack.c.b16 %v467, %v459
    %v556 = vpack.c.b16 %v468, %v460
    %v557 = vpack.c.b16 %v477, %v469
    %v558 = vpack.c.b16 %v478, %v470
    %v559 = vpack.c.b16 %v479, %v471
    %v560 = vpack.c.b16 %v480, %v472
    %v561 = vpack.c.b16 %v481, %v473
    %v562 = vpack.c.b16 %v482, %v474
    %v563 = vpack.c.b16 %v483, %v475
    %v564 = vpack.c.b16 %v484, %v476
    %v565 = vpack.c.b16 %v493, %v485
    %v566 = vpack.c.b16 %v494, %v486
    %v567 = vpack.c.b16 %v495, %v487
    %v568 = vpack.c.b16 %v496, %v488
    %v569 = vpack.c.b16 %v497, %v489
    %v570 = vpack.c.b16 %v498, %v490
    %v571 = vpack.c.b16 %v499, %v491
    %v572 = vpack.c.b16 %v500, %v492
    %v573 = vpack.c.b16 %v509, %v501
    %v574 = vpack.c.b16 %v510, %v502
    %v575 = vpack.c.b16 %v511, %v503
    %v576 = vpack.c.b16 %v512, %v504
    %v577 = vpack.c.b16 %v513, %v505
    %v578 = vpack.c.b16 %v514, %v506
    %v579 = vpack.c.b16 %v515, %v507
    %v580 = vpack.c.b16 %v516, %v508
    %v581 = vpack.c.b16 %v525, %v517
    %v582 = vpack.c.b16 %v526, %v518
    %v583 = vpack.c.b16 %v527, %v519
    %v584 = vpack.c.b16 %v528, %v520
    %v585 = vpack.c.b16 %v529, %v521
    %v586 = vpack.c.b16 %v530, %v522
    %v587 = vpack.c.b16 %v531, %v523
    %v588 = vpack.c.b16 %v532, %v524
    %v589 = vpack.c.b16 %v541, %v533
    %v590 = vpack.c.b16 %v542, %v534
    %v591 = vpack.c.b16 %v543, %v535
    %v592 = vpack.c.b16 %v544, %v536
    %v593 = vpack.c.b16 %v545, %v537
    %v594 = vpack.c.b16 %v546, %v538
    %v595 = vpack.c.b16 %v547, %v539
    %v596 = vpack.c.b16 %v548, %v540
    %v646 = vsel %vm161, %v355, 0
    %648 = vmatprep.subr.bf16.mxu0 %v550
    %649 = vmatpush1.bf16.msra.mxu0 %v549
    %650 = vmatprep.subr.bf16.mxu0 %v558
    %651 = vmatpush1.bf16.msra.mxu0 %v557
    %652 = vmatprep.subr.bf16.mxu0 %v566
    %653 = vmatpush1.bf16.msra.mxu0 %v565
    %654 = vmatprep.subr.bf16.mxu0 %v574
    %655 = vmatpush1.bf16.msra.mxu0 %v573
    %656 = vmatprep.subr.bf16.mxu0 %v582
    %657 = vmatpush1.bf16.msra.mxu0 %v581
    %658 = vmatprep.subr.bf16.mxu0 %v590
    %659 = vmatpush1.bf16.msra.mxu0 %v589
    %660 = vmatprep.subr.bf16.mxu0 0
    %661 = vmatpush1.bf16.msra.mxu0 0
    %662 = vmatprep.subr.bf16.mxu0 0
    %663 = vmatpush1.bf16.msra.mxu0 0
    %664 = vmatprep.subr.bf16.mxu0 0
    %665 = vmatpush1.bf16.msra.mxu0 0
    %666 = vmatprep.subr.bf16.mxu0 0
    %667 = vmatpush1.bf16.msra.mxu0 0
    %668 = vmatprep.subr.bf16.mxu0 0
    %669 = vmatpush1.bf16.msra.mxu0 0
    %670 = vmatprep.subr.bf16.mxu0 0
    %671 = vmatpush1.bf16.msra.mxu0 0
    %672 = vmatprep.subr.bf16.mxu0 0
    %673 = vmatpush1.bf16.msra.mxu0 0
    %674 = vmatprep.subr.bf16.mxu0 0
    %675 = vmatpush1.bf16.msra.mxu0 0
    %676 = vmatprep.subr.bf16.mxu0 0
    %677 = vmatpush1.bf16.msra.mxu0 0
    %678 = vmatprep.subr.bf16.mxu0 0
    %679 = vmatpush1.bf16.msra.mxu0 0
    %680 = vmatprep.mubr.bf16.mxu0 0
    %681 = vmatmul.mubr.bf16.gmra.mrb[0].mxu0 %v646
    %v682 = vpop.f32.mrb[0].mxu0
    %v683 = vadd.f32 0.0, %v682
    %v684 = vpop.f32.mrb[0].mxu0
    %v685 = vadd.f32 0.0, %v684
    %v686 = vpop.f32.mrb[0].mxu0
    %v687 = vpop.f32.mrb[0].mxu0
    %688 = vdwg.mxu0
    %689 = vmatprep.subr.bf16.mxu0 %v552
    %690 = vmatpush1.bf16.msra.mxu0 %v551
    %691 = vmatprep.subr.bf16.mxu0 %v560
    %692 = vmatpush1.bf16.msra.mxu0 %v559
    %693 = vmatprep.subr.bf16.mxu0 %v568
    %694 = vmatpush1.bf16.msra.mxu0 %v567
    %695 = vmatprep.subr.bf16.mxu0 %v576
    %696 = vmatpush1.bf16.msra.mxu0 %v575
    %697 = vmatprep.subr.bf16.mxu0 %v584
    %698 = vmatpush1.bf16.msra.mxu0 %v583
    %699 = vmatprep.subr.bf16.mxu0 %v592
    %700 = vmatpush1.bf16.msra.mxu0 %v591
    %701 = vmatprep.subr.bf16.mxu0 0
    %702 = vmatpush1.bf16.msra.mxu0 0
    %703 = vmatprep.subr.bf16.mxu0 0
    %704 = vmatpush1.bf16.msra.mxu0 0
    %705 = vmatprep.subr.bf16.mxu0 0
    %706 = vmatpush1.bf16.msra.mxu0 0
    %707 = vmatprep.subr.bf16.mxu0 0
    %708 = vmatpush1.bf16.msra.mxu0 0
    %709 = vmatprep.subr.bf16.mxu0 0
    %710 = vmatpush1.bf16.msra.mxu0 0
    %711 = vmatprep.subr.bf16.mxu0 0
    %712 = vmatpush1.bf16.msra.mxu0 0
    %713 = vmatprep.subr.bf16.mxu0 0
    %714 = vmatpush1.bf16.msra.mxu0 0
    %715 = vmatprep.subr.bf16.mxu0 0
    %716 = vmatpush1.bf16.msra.mxu0 0
    %717 = vmatprep.subr.bf16.mxu0 0
    %718 = vmatpush1.bf16.msra.mxu0 0
    %719 = vmatprep.subr.bf16.mxu0 0
    %720 = vmatpush1.bf16.msra.mxu0 0
    %721 = vmatprep.mubr.bf16.mxu0 0
    %722 = vmatmul.mubr.bf16.gmra.mrb[0].mxu0 %v646
    %v723 = vpop.f32.mrb[0].mxu0
    %v724 = vadd.f32 0.0, %v723
    %v725 = vpop.f32.mrb[0].mxu0
    %v726 = vadd.f32 0.0, %v725
    %v727 = vpop.f32.mrb[0].mxu0
    %v728 = vpop.f32.mrb[0].mxu0
    %729 = vdwg.mxu0
    %730 = vmatprep.subr.bf16.mxu0 %v554
    %731 = vmatpush1.bf16.msra.mxu0 %v553
    %732 = vmatprep.subr.bf16.mxu0 %v562
    %733 = vmatpush1.bf16.msra.mxu0 %v561
    %734 = vmatprep.subr.bf16.mxu0 %v570
    %735 = vmatpush1.bf16.msra.mxu0 %v569
    %736 = vmatprep.subr.bf16.mxu0 %v578
    %737 = vmatpush1.bf16.msra.mxu0 %v577
    %738 = vmatprep.subr.bf16.mxu0 %v586
    %739 = vmatpush1.bf16.msra.mxu0 %v585
    %740 = vmatprep.subr.bf16.mxu0 %v594
    %741 = vmatpush1.bf16.msra.mxu0 %v593
    %742 = vmatprep.subr.bf16.mxu0 0
    %743 = vmatpush1.bf16.msra.mxu0 0
    %744 = vmatprep.subr.bf16.mxu0 0
    %745 = vmatpush1.bf16.msra.mxu0 0
    %746 = vmatprep.subr.bf16.mxu0 0
    %747 = vmatpush1.bf16.msra.mxu0 0
    %748 = vmatprep.subr.bf16.mxu0 0
    %749 = vmatpush1.bf16.msra.mxu0 0
    %750 = vmatprep.subr.bf16.mxu0 0
    %751 = vmatpush1.bf16.msra.mxu0 0
    %752 = vmatprep.subr.bf16.mxu0 0
    %753 = vmatpush1.bf16.msra.mxu0 0
    %754 = vmatprep.subr.bf16.mxu0 0
    %755 = vmatpush1.bf16.msra.mxu0 0
    %756 = vmatprep.subr.bf16.mxu0 0
    %757 = vmatpush1.bf16.msra.mxu0 0
    %758 = vmatprep.subr.bf16.mxu0 0
    %759 = vmatpush1.bf16.msra.mxu0 0
    %760 = vmatprep.subr.bf16.mxu0 0
    %761 = vmatpush1.bf16.msra.mxu0 0
    %762 = vmatprep.mubr.bf16.mxu0 0
    %763 = vmatmul.mubr.bf16.gmra.mrb[0].mxu0 %v646
    %v764 = vpop.f32.mrb[0].mxu0
    %v765 = vadd.f32 0.0, %v764
    %v766 = vpop.f32.mrb[0].mxu0
    %v767 = vadd.f32 0.0, %v766
    %v768 = vpop.f32.mrb[0].mxu0
    %v769 = vpop.f32.mrb[0].mxu0
    %770 = vdwg.mxu0
    %771 = vmatprep.subr.bf16.mxu0 %v556
    %772 = vmatpush1.bf16.msra.mxu0 %v555
    %773 = vmatprep.subr.bf16.mxu0 %v564
    %774 = vmatpush1.bf16.msra.mxu0 %v563
    %775 = vmatprep.subr.bf16.mxu0 %v572
    %776 = vmatpush1.bf16.msra.mxu0 %v571
    %777 = vmatprep.subr.bf16.mxu0 %v580
    %778 = vmatpush1.bf16.msra.mxu0 %v579
    %779 = vmatprep.subr.bf16.mxu0 %v588
    %780 = vmatpush1.bf16.msra.mxu0 %v587
    %781 = vmatprep.subr.bf16.mxu0 %v596
    %782 = vmatpush1.bf16.msra.mxu0 %v595
    %783 = vmatprep.subr.bf16.mxu0 0
    %784 = vmatpush1.bf16.msra.mxu0 0
    %785 = vmatprep.subr.bf16.mxu0 0
    %786 = vmatpush1.bf16.msra.mxu0 0
    %787 = vmatprep.subr.bf16.mxu0 0
    %788 = vmatpush1.bf16.msra.mxu0 0
    %789 = vmatprep.subr.bf16.mxu0 0
    %790 = vmatpush1.bf16.msra.mxu0 0
    %791 = vmatprep.subr.bf16.mxu0 0
    %792 = vmatpush1.bf16.msra.mxu0 0
    %793 = vmatprep.subr.bf16.mxu0 0
    %794 = vmatpush1.bf16.msra.mxu0 0
    %795 = vmatprep.subr.bf16.mxu0 0
    %796 = vmatpush1.bf16.msra.mxu0 0
    %797 = vmatprep.subr.bf16.mxu0 0
    %798 = vmatpush1.bf16.msra.mxu0 0
    %799 = vmatprep.subr.bf16.mxu0 0
    %800 = vmatpush1.bf16.msra.mxu0 0
    %801 = vmatprep.subr.bf16.mxu0 0
    %802 = vmatpush1.bf16.msra.mxu0 0
    %803 = vmatprep.mubr.bf16.mxu0 0
    %804 = vmatmul.mubr.bf16.gmra.mrb[0].mxu0 %v646
    %v805 = vpop.f32.mrb[0].mxu0
    %v806 = vadd.f32 0.0, %v805
    %v807 = vpop.f32.mrb[0].mxu0
    %v808 = vadd.f32 0.0, %v807
    %v809 = vpop.f32.mrb[0].mxu0
    %v810 = vpop.f32.mrb[0].mxu0
    %811 = vdwg.mxu0
    %v860 = vunpack.c.l.b16 %v307
    %v861 = vunpack.c.h.b16 %v307
    %v862 = vunpack.c.l.b16 %v308
    %v863 = vunpack.c.h.b16 %v308
    %v864 = vunpack.c.l.b16 %v309
    %v865 = vunpack.c.h.b16 %v309
    %v866 = vunpack.c.l.b16 %v310
    %v867 = vunpack.c.h.b16 %v310
    %v868 = vunpack.c.l.b16 %v311
    %v869 = vunpack.c.h.b16 %v311
    %v870 = vunpack.c.l.b16 %v312
    %v871 = vunpack.c.h.b16 %v312
    %v872 = vunpack.c.l.b16 %v313
    %v873 = vunpack.c.h.b16 %v313
    %v874 = vunpack.c.l.b16 %v314
    %v875 = vunpack.c.h.b16 %v314
    %v876 = vunpack.c.l.b16 %v315
    %v877 = vunpack.c.h.b16 %v315
    %v878 = vunpack.c.l.b16 %v316
    %v879 = vunpack.c.h.b16 %v316
    %v880 = vunpack.c.l.b16 %v317
    %v881 = vunpack.c.h.b16 %v317
    %v882 = vunpack.c.l.b16 %v318
    %v883 = vunpack.c.h.b16 %v318
    %v884 = vunpack.c.l.b16 %v319
    %v885 = vunpack.c.h.b16 %v319
    %v886 = vunpack.c.l.b16 %v320
    %v887 = vunpack.c.h.b16 %v320
    %v888 = vunpack.c.l.b16 %v321
    %v889 = vunpack.c.h.b16 %v321
    %v890 = vunpack.c.l.b16 %v322
    %v891 = vunpack.c.h.b16 %v322
    %v892 = vunpack.c.l.b16 %v323
    %v893 = vunpack.c.h.b16 %v323
    %v894 = vunpack.c.l.b16 %v324
    %v895 = vunpack.c.h.b16 %v324
    %v896 = vunpack.c.l.b16 %v325
    %v897 = vunpack.c.h.b16 %v325
    %v898 = vunpack.c.l.b16 %v326
    %v899 = vunpack.c.h.b16 %v326
    %v900 = vunpack.c.l.b16 %v327
    %v901 = vunpack.c.h.b16 %v327
    %v902 = vunpack.c.l.b16 %v328
    %v903 = vunpack.c.h.b16 %v328
    %v904 = vunpack.c.l.b16 %v329
    %v905 = vunpack.c.h.b16 %v329
    %v906 = vunpack.c.l.b16 %v330
    %v907 = vunpack.c.h.b16 %v330
    %v908 = vunpack.c.l.b16 %v331
    %v909 = vunpack.c.h.b16 %v331
    %v910 = vunpack.c.l.b16 %v332
    %v911 = vunpack.c.h.b16 %v332
    %v912 = vunpack.c.l.b16 %v333
    %v913 = vunpack.c.h.b16 %v333
    %v914 = vunpack.c.l.b16 %v334
    %v915 = vunpack.c.h.b16 %v334
    %v916 = vunpack.c.l.b16 %v335
    %v917 = vunpack.c.h.b16 %v335
    %v918 = vunpack.c.l.b16 %v336
    %v919 = vunpack.c.h.b16 %v336
    %v920 = vunpack.c.l.b16 %v337
    %v921 = vunpack.c.h.b16 %v337
    %v922 = vunpack.c.l.b16 %v338
    %v923 = vunpack.c.h.b16 %v338
    %v924 = vunpack.c.l.b16 %v339
    %v925 = vunpack.c.h.b16 %v339
    %v926 = vunpack.c.l.b16 %v340
    %v927 = vunpack.c.h.b16 %v340
    %v928 = vunpack.c.l.b16 %v341
    %v929 = vunpack.c.h.b16 %v341
    %v930 = vunpack.c.l.b16 %v342
    %v931 = vunpack.c.h.b16 %v342
    %v932 = vunpack.c.l.b16 %v343
    %v933 = vunpack.c.h.b16 %v343
    %v934 = vunpack.c.l.b16 %v344
    %v935 = vunpack.c.h.b16 %v344
    %v936 = vunpack.c.l.b16 %v345
    %v937 = vunpack.c.h.b16 %v345
    %v938 = vunpack.c.l.b16 %v346
    %v939 = vunpack.c.h.b16 %v346
    %v940 = vunpack.c.l.b16 %v347
    %v941 = vunpack.c.h.b16 %v347
    %v942 = vunpack.c.l.b16 %v348
    %v943 = vunpack.c.h.b16 %v348
    %v944 = vunpack.c.l.b16 %v349
    %v945 = vunpack.c.h.b16 %v349
    %v946 = vunpack.c.l.b16 %v350
    %v947 = vunpack.c.h.b16 %v350
    %v948 = vunpack.c.l.b16 %v351
    %v949 = vunpack.c.h.b16 %v351
    %v950 = vunpack.c.l.b16 %v352
    %v951 = vunpack.c.h.b16 %v352
    %v952 = vunpack.c.l.b16 %v353
    %v953 = vunpack.c.h.b16 %v353
    %v954 = vunpack.c.l.b16 %v354
    %v955 = vunpack.c.h.b16 %v354
    %v956 = vpack.c.b16 %v868, %v860
    %v957 = vpack.c.b16 %v869, %v861
    %v958 = vpack.c.b16 %v870, %v862
    %v959 = vpack.c.b16 %v871, %v863
    %v960 = vpack.c.b16 %v872, %v864
    %v961 = vpack.c.b16 %v873, %v865
    %v962 = vpack.c.b16 %v874, %v866
    %v963 = vpack.c.b16 %v875, %v867
    %v964 = vpack.c.b16 %v884, %v876
    %v965 = vpack.c.b16 %v885, %v877
    %v966 = vpack.c.b16 %v886, %v878
    %v967 = vpack.c.b16 %v887, %v879
    %v968 = vpack.c.b16 %v888, %v880
    %v969 = vpack.c.b16 %v889, %v881
    %v970 = vpack.c.b16 %v890, %v882
    %v971 = vpack.c.b16 %v891, %v883
    %v972 = vpack.c.b16 %v900, %v892
    %v973 = vpack.c.b16 %v901, %v893
    %v974 = vpack.c.b16 %v902, %v894
    %v975 = vpack.c.b16 %v903, %v895
    %v976 = vpack.c.b16 %v904, %v896
    %v977 = vpack.c.b16 %v905, %v897
    %v978 = vpack.c.b16 %v906, %v898
    %v979 = vpack.c.b16 %v907, %v899
    %v980 = vpack.c.b16 %v916, %v908
    %v981 = vpack.c.b16 %v917, %v909
    %v982 = vpack.c.b16 %v918, %v910
    %v983 = vpack.c.b16 %v919, %v911
    %v984 = vpack.c.b16 %v920, %v912
    %v985 = vpack.c.b16 %v921, %v913
    %v986 = vpack.c.b16 %v922, %v914
    %v987 = vpack.c.b16 %v923, %v915
    %v988 = vpack.c.b16 %v932, %v924
    %v989 = vpack.c.b16 %v933, %v925
    %v990 = vpack.c.b16 %v934, %v926
    %v991 = vpack.c.b16 %v935, %v927
    %v992 = vpack.c.b16 %v936, %v928
    %v993 = vpack.c.b16 %v937, %v929
    %v994 = vpack.c.b16 %v938, %v930
    %v995 = vpack.c.b16 %v939, %v931
    %v996 = vpack.c.b16 %v948, %v940
    %v997 = vpack.c.b16 %v949, %v941
    %v998 = vpack.c.b16 %v950, %v942
    %v999 = vpack.c.b16 %v951, %v943
    %v1000 = vpack.c.b16 %v952, %v944
    %v1001 = vpack.c.b16 %v953, %v945
    %v1002 = vpack.c.b16 %v954, %v946
    %v1003 = vpack.c.b16 %v955, %v947
    %v1053 = vsel %vm161, %v306, 0
    %1055 = vmatprep.subr.bf16.mxu0 %v957
    %1056 = vmatpush1.bf16.msra.mxu0 %v956
    %1057 = vmatprep.subr.bf16.mxu0 %v965
    %1058 = vmatpush1.bf16.msra.mxu0 %v964
    %1059 = vmatprep.subr.bf16.mxu0 %v973
    %1060 = vmatpush1.bf16.msra.mxu0 %v972
    %1061 = vmatprep.subr.bf16.mxu0 %v981
    %1062 = vmatpush1.bf16.msra.mxu0 %v980
    %1063 = vmatprep.subr.bf16.mxu0 %v989
    %1064 = vmatpush1.bf16.msra.mxu0 %v988
    %1065 = vmatprep.subr.bf16.mxu0 %v997
    %1066 = vmatpush1.bf16.msra.mxu0 %v996
    %1067 = vmatprep.subr.bf16.mxu0 0
    %1068 = vmatpush1.bf16.msra.mxu0 0
    %1069 = vmatprep.subr.bf16.mxu0 0
    %1070 = vmatpush1.bf16.msra.mxu0 0
    %1071 = vmatprep.subr.bf16.mxu0 0
    %1072 = vmatpush1.bf16.msra.mxu0 0
    %1073 = vmatprep.subr.bf16.mxu0 0
    %1074 = vmatpush1.bf16.msra.mxu0 0
    %1075 = vmatprep.subr.bf16.mxu0 0
    %1076 = vmatpush1.bf16.msra.mxu0 0
    %1077 = vmatprep.subr.bf16.mxu0 0
    %1078 = vmatpush1.bf16.msra.mxu0 0
    %1079 = vmatprep.subr.bf16.mxu0 0
    %1080 = vmatpush1.bf16.msra.mxu0 0
    %1081 = vmatprep.subr.bf16.mxu0 0
    %1082 = vmatpush1.bf16.msra.mxu0 0
    %1083 = vmatprep.subr.bf16.mxu0 0
    %1084 = vmatpush1.bf16.msra.mxu0 0
    %1085 = vmatprep.subr.bf16.mxu0 0
    %1086 = vmatpush1.bf16.msra.mxu0 0
    %1087 = vmatprep.mubr.bf16.mxu0 0
    %1088 = vmatmul.mubr.bf16.gmra.mrb[0].mxu0 %v1053
    %v1089 = vpop.f32.mrb[0].mxu0
    %v1090 = vadd.f32 %v683, %v1089
    %v1091 = vpop.f32.mrb[0].mxu0
    %v1092 = vadd.f32 %v685, %v1091
    %v1093 = vpop.f32.mrb[0].mxu0
    %v1094 = vpop.f32.mrb[0].mxu0
    %1095 = vdwg.mxu0
    %1096 = vmatprep.subr.bf16.mxu0 %v959
    %1097 = vmatpush1.bf16.msra.mxu0 %v958
    %1098 = vmatprep.subr.bf16.mxu0 %v967
    %1099 = vmatpush1.bf16.msra.mxu0 %v966
    %1100 = vmatprep.subr.bf16.mxu0 %v975
    %1101 = vmatpush1.bf16.msra.mxu0 %v974
    %1102 = vmatprep.subr.bf16.mxu0 %v983
    %1103 = vmatpush1.bf16.msra.mxu0 %v982
    %1104 = vmatprep.subr.bf16.mxu0 %v991
    %1105 = vmatpush1.bf16.msra.mxu0 %v990
    %1106 = vmatprep.subr.bf16.mxu0 %v999
    %1107 = vmatpush1.bf16.msra.mxu0 %v998
    %1108 = vmatprep.subr.bf16.mxu0 0
    %1109 = vmatpush1.bf16.msra.mxu0 0
    %1110 = vmatprep.subr.bf16.mxu0 0
    %1111 = vmatpush1.bf16.msra.mxu0 0
    %1112 = vmatprep.subr.bf16.mxu0 0
    %1113 = vmatpush1.bf16.msra.mxu0 0
    %1114 = vmatprep.subr.bf16.mxu0 0
    %1115 = vmatpush1.bf16.msra.mxu0 0
    %1116 = vmatprep.subr.bf16.mxu0 0
    %1117 = vmatpush1.bf16.msra.mxu0 0
    %1118 = vmatprep.subr.bf16.mxu0 0
    %1119 = vmatpush1.bf16.msra.mxu0 0
    %1120 = vmatprep.subr.bf16.mxu0 0
    %1121 = vmatpush1.bf16.msra.mxu0 0
    %1122 = vmatprep.subr.bf16.mxu0 0
    %1123 = vmatpush1.bf16.msra.mxu0 0
    %1124 = vmatprep.subr.bf16.mxu0 0
    %1125 = vmatpush1.bf16.msra.mxu0 0
    %1126 = vmatprep.subr.bf16.mxu0 0
    %1127 = vmatpush1.bf16.msra.mxu0 0
    %1128 = vmatprep.mubr.bf16.mxu0 0
    %1129 = vmatmul.mubr.bf16.gmra.mrb[0].mxu0 %v1053
    %v1130 = vpop.f32.mrb[0].mxu0
    %v1131 = vadd.f32 %v724, %v1130
    %v1132 = vpop.f32.mrb[0].mxu0
    %v1133 = vadd.f32 %v726, %v1132
    %v1134 = vpop.f32.mrb[0].mxu0
    %v1135 = vpop.f32.mrb[0].mxu0
    %1136 = vdwg.mxu0
    %1137 = vmatprep.subr.bf16.mxu0 %v961
    %1138 = vmatpush1.bf16.msra.mxu0 %v960
    %1139 = vmatprep.subr.bf16.mxu0 %v969
    %1140 = vmatpush1.bf16.msra.mxu0 %v968
    %1141 = vmatprep.subr.bf16.mxu0 %v977
    %1142 = vmatpush1.bf16.msra.mxu0 %v976
    %1143 = vmatprep.subr.bf16.mxu0 %v985
    %1144 = vmatpush1.bf16.msra.mxu0 %v984
    %1145 = vmatprep.subr.bf16.mxu0 %v993
    %1146 = vmatpush1.bf16.msra.mxu0 %v992
    %1147 = vmatprep.subr.bf16.mxu0 %v1001
    %1148 = vmatpush1.bf16.msra.mxu0 %v1000
    %1149 = vmatprep.subr.bf16.mxu0 0
    %1150 = vmatpush1.bf16.msra.mxu0 0
    %1151 = vmatprep.subr.bf16.mxu0 0
    %1152 = vmatpush1.bf16.msra.mxu0 0
    %1153 = vmatprep.subr.bf16.mxu0 0
    %1154 = vmatpush1.bf16.msra.mxu0 0
    %1155 = vmatprep.subr.bf16.mxu0 0
    %1156 = vmatpush1.bf16.msra.mxu0 0
    %1157 = vmatprep.subr.bf16.mxu0 0
    %1158 = vmatpush1.bf16.msra.mxu0 0
    %1159 = vmatprep.subr.bf16.mxu0 0
    %1160 = vmatpush1.bf16.msra.mxu0 0
    %1161 = vmatprep.subr.bf16.mxu0 0
    %1162 = vmatpush1.bf16.msra.mxu0 0
    %1163 = vmatprep.subr.bf16.mxu0 0
    %1164 = vmatpush1.bf16.msra.mxu0 0
    %1165 = vmatprep.subr.bf16.mxu0 0
    %1166 = vmatpush1.bf16.msra.mxu0 0
    %1167 = vmatprep.subr.bf16.mxu0 0
    %1168 = vmatpush1.bf16.msra.mxu0 0
    %1169 = vmatprep.mubr.bf16.mxu0 0
    %1170 = vmatmul.mubr.bf16.gmra.mrb[0].mxu0 %v1053
    %v1171 = vpop.f32.mrb[0].mxu0
    %v1172 = vadd.f32 %v765, %v1171
    %v1173 = vpop.f32.mrb[0].mxu0
    %v1174 = vadd.f32 %v767, %v1173
    %v1175 = vpop.f32.mrb[0].mxu0
    %v1176 = vpop.f32.mrb[0].mxu0
    %1177 = vdwg.mxu0
    %1178 = vmatprep.subr.bf16.mxu0 %v963
    %1179 = vmatpush1.bf16.msra.mxu0 %v962
    %1180 = vmatprep.subr.bf16.mxu0 %v971
    %1181 = vmatpush1.bf16.msra.mxu0 %v970
    %1182 = vmatprep.subr.bf16.mxu0 %v979
    %1183 = vmatpush1.bf16.msra.mxu0 %v978
    %1184 = vmatprep.subr.bf16.mxu0 %v987
    %1185 = vmatpush1.bf16.msra.mxu0 %v986
    %1186 = vmatprep.subr.bf16.mxu0 %v995
    %1187 = vmatpush1.bf16.msra.mxu0 %v994
    %1188 = vmatprep.subr.bf16.mxu0 %v1003
    %1189 = vmatpush1.bf16.msra.mxu0 %v1002
    %1190 = vmatprep.subr.bf16.mxu0 0
    %1191 = vmatpush1.bf16.msra.mxu0 0
    %1192 = vmatprep.subr.bf16.mxu0 0
    %1193 = vmatpush1.bf16.msra.mxu0 0
    %1194 = vmatprep.subr.bf16.mxu0 0
    %1195 = vmatpush1.bf16.msra.mxu0 0
    %1196 = vmatprep.subr.bf16.mxu0 0
    %1197 = vmatpush1.bf16.msra.mxu0 0
    %1198 = vmatprep.subr.bf16.mxu0 0
    %1199 = vmatpush1.bf16.msra.mxu0 0
    %1200 = vmatprep.subr.bf16.mxu0 0
    %1201 = vmatpush1.bf16.msra.mxu0 0
    %1202 = vmatprep.subr.bf16.mxu0 0
    %1203 = vmatpush1.bf16.msra.mxu0 0
    %1204 = vmatprep.subr.bf16.mxu0 0
    %1205 = vmatpush1.bf16.msra.mxu0 0
    %1206 = vmatprep.subr.bf16.mxu0 0
    %1207 = vmatpush1.bf16.msra.mxu0 0
    %1208 = vmatprep.subr.bf16.mxu0 0
    %1209 = vmatpush1.bf16.msra.mxu0 0
    %1210 = vmatprep.mubr.bf16.mxu0 0
    %1211 = vmatmul.mubr.bf16.gmra.mrb[0].mxu0 %v1053
    %v1212 = vpop.f32.mrb[0].mxu0
    %v1213 = vadd.f32 %v806, %v1212
    %v1214 = vpop.f32.mrb[0].mxu0
    %v1215 = vadd.f32 %v808, %v1214
    %v1216 = vpop.f32.mrb[0].mxu0
    %v1217 = vpop.f32.mrb[0].mxu0
    %1218 = vdwg.mxu0
    %v1219 = vld [vmem:[#allocation10] ss:$4 sm:$0xff]
    %v1221 = vlaneseq
    %v1222 = vshrl.u32 %v1221, 7
    %v1223 = vsub.s32 0, %v1222
    %v1224 = vrot.slane %v1219, %v1223
    %v1225 = vlaneseq
    %v1226 = vshrl.u32 %v1225, 7
    %v1227 = vsub.s32 1, %v1226
    %v1228 = vrot.slane %v1219, %v1227
    %v1229 = vlaneseq
    %v1230 = vshrl.u32 %v1229, 7
    %v1231 = vsub.s32 2, %v1230
    %v1232 = vrot.slane %v1219, %v1231
    %v1233 = vlaneseq
    %v1234 = vshrl.u32 %v1233, 7
    %v1235 = vsub.s32 3, %v1234
    %v1236 = vrot.slane %v1219, %v1235
    %v1237 = vlaneseq
    %v1238 = vshrl.u32 %v1237, 7
    %v1239 = vsub.s32 4, %v1238
    %v1240 = vrot.slane %v1219, %v1239
    %v1241 = vlaneseq
    %v1242 = vshrl.u32 %v1241, 7
    %v1243 = vsub.s32 5, %v1242
    %v1244 = vrot.slane %v1219, %v1243
    %v1245 = vlaneseq
    %v1246 = vshrl.u32 %v1245, 7
    %v1247 = vsub.s32 6, %v1246
    %v1248 = vrot.slane %v1219, %v1247
    %v1249 = vlaneseq
    %v1250 = vshrl.u32 %v1249, 7
    %v1251 = vsub.s32 7, %v1250
    %v1252 = vrot.slane %v1219, %v1251
    %v1261 = vadd.f32 %v1090, %v1224
    %v1262 = vadd.f32 %v1092, %v1228
    %v1263 = vadd.f32 %v1131, %v1232
    %v1264 = vadd.f32 %v1133, %v1236
    %v1265 = vadd.f32 %v1172, %v1240
    %v1266 = vadd.f32 %v1174, %v1244
    %v1267 = vadd.f32 %v1213, %v1248
    %v1268 = vadd.f32 %v1215, %v1252
    %v1269 = vmax.f32 %v1261, 0.0
    %v1270 = vmax.f32 %v1262, 0.0
    %v1271 = vmax.f32 %v1263, 0.0
    %v1272 = vmax.f32 %v1264, 0.0
    %v1273 = vmax.f32 %v1265, 0.0
    %v1274 = vmax.f32 %v1266, 0.0
    %v1275 = vmax.f32 %v1267, 0.0
    %v1276 = vmax.f32 %v1268, 0.0
    %v1277 = vpack.c.bf16 %v1269, %v1269
    %v1278 = vpack.c.bf16 %v1270, %v1270
    %v1279 = vpack.c.bf16 %v1271, %v1271
    %v1280 = vpack.c.bf16 %v1272, %v1272
    %v1281 = vpack.c.bf16 %v1273, %v1273
    %v1282 = vpack.c.bf16 %v1274, %v1274
    %v1283 = vpack.c.bf16 %v1275, %v1275
    %v1284 = vpack.c.bf16 %v1276, %v1276
    %v1285 = vld [vmem:[#allocation9] sm:$0xff]
    %v1286 = vld [vmem:[#allocation9 + $0x8] sm:$0xff]
    %v1287 = vld [vmem:[#allocation9 + $0x10] sm:$0xff]
    %v1288 = vld [vmem:[#allocation9 + $0x18] sm:$0xff]
    %v1289 = vld [vmem:[#allocation9 + $0x20] sm:$0xff]
    %v1290 = vld [vmem:[#allocation9 + $0x28] sm:$0xff]
    %v1291 = vld [vmem:[#allocation9 + $0x30] sm:$0xff]
    %v1292 = vld [vmem:[#allocation9 + $0x38] sm:$0xff]
    %v1293 = vld [vmem:[#allocation9 + $0x40] sm:$0xff]
    %v1294 = vld [vmem:[#allocation9 + $0x48] sm:$0xff]
    %v1295 = vld [vmem:[#allocation9 + $0x50] sm:$0xff]
    %v1296 = vld [vmem:[#allocation9 + $0x58] sm:$0xff]
    %v1297 = vld [vmem:[#allocation9 + $0x60] sm:$0xff]
    %v1298 = vld [vmem:[#allocation9 + $0x68] sm:$0xff]
    %v1299 = vld [vmem:[#allocation9 + $0x70] sm:$0xff]
    %v1300 = vld [vmem:[#allocation9 + $0x78] sm:$0xff]
    %v1301 = vld [vmem:[#allocation9 + $0x80] sm:$0xff]
    %v1302 = vld [vmem:[#allocation9 + $0x88] sm:$0xff]
    %v1303 = vld [vmem:[#allocation9 + $0x90] sm:$0xff]
    %v1304 = vld [vmem:[#allocation9 + $0x98] sm:$0xff]
    %v1305 = vld [vmem:[#allocation9 + $0xa0] sm:$0xff]
    %v1306 = vld [vmem:[#allocation9 + $0xa8] sm:$0xff]
    %v1307 = vld [vmem:[#allocation9 + $0xb0] sm:$0xff]
    %v1308 = vld [vmem:[#allocation9 + $0xb8] sm:$0xff]
    %v1309 = vld [vmem:[#allocation9 + $0xc0] sm:$0xff]
    %v1310 = vld [vmem:[#allocation9 + $0xc8] sm:$0xff]
    %v1311 = vld [vmem:[#allocation9 + $0xd0] sm:$0xff]
    %v1312 = vld [vmem:[#allocation9 + $0xd8] sm:$0xff]
    %v1313 = vld [vmem:[#allocation9 + $0xe0] sm:$0xff]
    %v1314 = vld [vmem:[#allocation9 + $0xe8] sm:$0xff]
    %v1315 = vld [vmem:[#allocation9 + $0xf0] sm:$0xff]
    %v1316 = vld [vmem:[#allocation9 + $0xf8] sm:$0xff]
    %v1317 = vld [vmem:[#allocation9 + $0x100] sm:$0xff]
    %v1318 = vld [vmem:[#allocation9 + $0x108] sm:$0xff]
    %v1319 = vld [vmem:[#allocation9 + $0x110] sm:$0xff]
    %v1320 = vld [vmem:[#allocation9 + $0x118] sm:$0xff]
    %v1321 = vld [vmem:[#allocation9 + $0x120] sm:$0xff]
    %v1322 = vld [vmem:[#allocation9 + $0x128] sm:$0xff]
    %v1323 = vld [vmem:[#allocation9 + $0x130] sm:$0xff]
    %v1324 = vld [vmem:[#allocation9 + $0x138] sm:$0xff]
    %v1325 = vld [vmem:[#allocation9 + $0x140] sm:$0xff]
    %v1326 = vld [vmem:[#allocation9 + $0x148] sm:$0xff]
    %v1327 = vld [vmem:[#allocation9 + $0x150] sm:$0xff]
    %v1328 = vld [vmem:[#allocation9 + $0x158] sm:$0xff]
    %v1329 = vld [vmem:[#allocation9 + $0x160] sm:$0xff]
    %v1330 = vld [vmem:[#allocation9 + $0x168] sm:$0xff]
    %v1331 = vld [vmem:[#allocation9 + $0x170] sm:$0xff]
    %v1332 = vld [vmem:[#allocation9 + $0x178] sm:$0xff]
    %v1333 = vld [vmem:[#allocation9 + $0x180] sm:$0xff]
    %v1334 = vld [vmem:[#allocation9 + $0x188] sm:$0xff]
    %v1335 = vld [vmem:[#allocation9 + $0x190] sm:$0xff]
    %v1336 = vld [vmem:[#allocation9 + $0x198] sm:$0xff]
    %v1337 = vld [vmem:[#allocation9 + $0x1a0] sm:$0xff]
    %v1338 = vld [vmem:[#allocation9 + $0x1a8] sm:$0xff]
    %v1339 = vld [vmem:[#allocation9 + $0x1b0] sm:$0xff]
    %v1340 = vld [vmem:[#allocation9 + $0x1b8] sm:$0xff]
    %v1341 = vld [vmem:[#allocation9 + $0x1c0] sm:$0xff]
    %v1342 = vld [vmem:[#allocation9 + $0x1c8] sm:$0xff]
    %v1343 = vld [vmem:[#allocation9 + $0x1d0] sm:$0xff]
    %v1344 = vld [vmem:[#allocation9 + $0x1d8] sm:$0xff]
    %v1345 = vld [vmem:[#allocation9 + $0x1e0] sm:$0xff]
    %v1346 = vld [vmem:[#allocation9 + $0x1e8] sm:$0xff]
    %v1347 = vld [vmem:[#allocation9 + $0x1f0] sm:$0xff]
    %v1348 = vld [vmem:[#allocation9 + $0x1f8] sm:$0xff]
    %v1349 = vld [vmem:[#allocation9 + $0x200] sm:$0xff]
    %v1350 = vld [vmem:[#allocation9 + $0x208] sm:$0xff]
    %v1351 = vld [vmem:[#allocation9 + $0x210] sm:$0xff]
    %v1352 = vld [vmem:[#allocation9 + $0x218] sm:$0xff]
    %v1353 = vld [vmem:[#allocation9 + $0x220] sm:$0xff]
    %v1354 = vld [vmem:[#allocation9 + $0x228] sm:$0xff]
    %v1355 = vld [vmem:[#allocation9 + $0x230] sm:$0xff]
    %v1356 = vld [vmem:[#allocation9 + $0x238] sm:$0xff]
    %v1357 = vld [vmem:[#allocation9 + $0x240] sm:$0xff]
    %v1358 = vld [vmem:[#allocation9 + $0x248] sm:$0xff]
    %v1359 = vld [vmem:[#allocation9 + $0x250] sm:$0xff]
    %v1360 = vld [vmem:[#allocation9 + $0x258] sm:$0xff]
    %v1361 = vld [vmem:[#allocation9 + $0x260] sm:$0xff]
    %v1362 = vld [vmem:[#allocation9 + $0x268] sm:$0xff]
    %v1363 = vld [vmem:[#allocation9 + $0x270] sm:$0xff]
    %v1364 = vld [vmem:[#allocation9 + $0x278] sm:$0xff]
    %v1365 = vld [vmem:[#allocation9 + $0x280] sm:$0xff]
    %v1366 = vld [vmem:[#allocation9 + $0x288] sm:$0xff]
    %v1367 = vld [vmem:[#allocation9 + $0x290] sm:$0xff]
    %v1368 = vld [vmem:[#allocation9 + $0x298] sm:$0xff]
    %v1369 = vld [vmem:[#allocation9 + $0x2a0] sm:$0xff]
    %v1370 = vld [vmem:[#allocation9 + $0x2a8] sm:$0xff]
    %v1371 = vld [vmem:[#allocation9 + $0x2b0] sm:$0xff]
    %v1372 = vld [vmem:[#allocation9 + $0x2b8] sm:$0xff]
    %v1373 = vld [vmem:[#allocation9 + $0x2c0] sm:$0xff]
    %v1374 = vld [vmem:[#allocation9 + $0x2c8] sm:$0xff]
    %v1375 = vld [vmem:[#allocation9 + $0x2d0] sm:$0xff]
    %v1376 = vld [vmem:[#allocation9 + $0x2d8] sm:$0xff]
    %v1377 = vld [vmem:[#allocation9 + $0x2e0] sm:$0xff]
    %v1378 = vld [vmem:[#allocation9 + $0x2e8] sm:$0xff]
    %v1379 = vld [vmem:[#allocation9 + $0x2f0] sm:$0xff]
    %v1380 = vld [vmem:[#allocation9 + $0x2f8] sm:$0xff]
    %v1381 = vld [vmem:[#allocation9 + $0x300] sm:$0xff]
    %v1382 = vld [vmem:[#allocation9 + $0x308] sm:$0xff]
    %v1383 = vld [vmem:[#allocation9 + $0x310] sm:$0xff]
    %v1384 = vld [vmem:[#allocation9 + $0x318] sm:$0xff]
    %v1385 = vld [vmem:[#allocation9 + $0x320] sm:$0xff]
    %v1386 = vld [vmem:[#allocation9 + $0x328] sm:$0xff]
    %v1387 = vld [vmem:[#allocation9 + $0x330] sm:$0xff]
    %v1388 = vld [vmem:[#allocation9 + $0x338] sm:$0xff]
    %v1389 = vld [vmem:[#allocation9 + $0x340] sm:$0xff]
    %v1390 = vld [vmem:[#allocation9 + $0x348] sm:$0xff]
    %v1391 = vld [vmem:[#allocation9 + $0x350] sm:$0xff]
    %v1392 = vld [vmem:[#allocation9 + $0x358] sm:$0xff]
    %v1393 = vld [vmem:[#allocation9 + $0x360] sm:$0xff]
    %v1394 = vld [vmem:[#allocation9 + $0x368] sm:$0xff]
    %v1395 = vld [vmem:[#allocation9 + $0x370] sm:$0xff]
    %v1396 = vld [vmem:[#allocation9 + $0x378] sm:$0xff]
    %v1397 = vld [vmem:[#allocation9 + $0x380] sm:$0xff]
    %v1398 = vld [vmem:[#allocation9 + $0x388] sm:$0xff]
    %v1399 = vld [vmem:[#allocation9 + $0x390] sm:$0xff]
    %v1400 = vld [vmem:[#allocation9 + $0x398] sm:$0xff]
    %v1401 = vld [vmem:[#allocation9 + $0x3a0] sm:$0xff]
    %v1402 = vld [vmem:[#allocation9 + $0x3a8] sm:$0xff]
    %v1403 = vld [vmem:[#allocation9 + $0x3b0] sm:$0xff]
    %v1404 = vld [vmem:[#allocation9 + $0x3b8] sm:$0xff]
    %v1405 = vld [vmem:[#allocation9 + $0x3c0] sm:$0xff]
    %v1406 = vld [vmem:[#allocation9 + $0x3c8] sm:$0xff]
    %v1407 = vld [vmem:[#allocation9 + $0x3d0] sm:$0xff]
    %v1408 = vld [vmem:[#allocation9 + $0x3d8] sm:$0xff]
    %v1409 = vld [vmem:[#allocation9 + $0x3e0] sm:$0xff]
    %v1410 = vld [vmem:[#allocation9 + $0x3e8] sm:$0xff]
    %v1411 = vld [vmem:[#allocation9 + $0x3f0] sm:$0xff]
    %v1412 = vld [vmem:[#allocation9 + $0x3f8] sm:$0xff]
    %v1413 = vld [vmem:[#allocation9 + $0x400] sm:$0xff]
    %v1414 = vld [vmem:[#allocation9 + $0x408] sm:$0xff]
    %v1415 = vld [vmem:[#allocation9 + $0x410] sm:$0xff]
    %v1416 = vld [vmem:[#allocation9 + $0x418] sm:$0xff]
    %v1417 = vld [vmem:[#allocation9 + $0x420] sm:$0xff]
    %v1418 = vld [vmem:[#allocation9 + $0x428] sm:$0xff]
    %v1419 = vld [vmem:[#allocation9 + $0x430] sm:$0xff]
    %v1420 = vld [vmem:[#allocation9 + $0x438] sm:$0xff]
    %v1421 = vld [vmem:[#allocation9 + $0x440] sm:$0xff]
    %v1422 = vld [vmem:[#allocation9 + $0x448] sm:$0xff]
    %v1423 = vld [vmem:[#allocation9 + $0x450] sm:$0xff]
    %v1424 = vld [vmem:[#allocation9 + $0x458] sm:$0xff]
    %v1425 = vld [vmem:[#allocation9 + $0x460] sm:$0xff]
    %v1426 = vld [vmem:[#allocation9 + $0x468] sm:$0xff]
    %v1427 = vld [vmem:[#allocation9 + $0x470] sm:$0xff]
    %v1428 = vld [vmem:[#allocation9 + $0x478] sm:$0xff]
    %v1429 = vld [vmem:[#allocation9 + $0x480] sm:$0xff]
    %v1430 = vld [vmem:[#allocation9 + $0x488] sm:$0xff]
    %v1431 = vld [vmem:[#allocation9 + $0x490] sm:$0xff]
    %v1432 = vld [vmem:[#allocation9 + $0x498] sm:$0xff]
    %v1433 = vld [vmem:[#allocation9 + $0x4a0] sm:$0xff]
    %v1434 = vld [vmem:[#allocation9 + $0x4a8] sm:$0xff]
    %v1435 = vld [vmem:[#allocation9 + $0x4b0] sm:$0xff]
    %v1436 = vld [vmem:[#allocation9 + $0x4b8] sm:$0xff]
    %v1437 = vld [vmem:[#allocation9 + $0x4c0] sm:$0xff]
    %v1438 = vld [vmem:[#allocation9 + $0x4c8] sm:$0xff]
    %v1439 = vld [vmem:[#allocation9 + $0x4d0] sm:$0xff]
    %v1440 = vld [vmem:[#allocation9 + $0x4d8] sm:$0xff]
    %v1441 = vld [vmem:[#allocation9 + $0x4e0] sm:$0xff]
    %v1442 = vld [vmem:[#allocation9 + $0x4e8] sm:$0xff]
    %v1443 = vld [vmem:[#allocation9 + $0x4f0] sm:$0xff]
    %v1444 = vld [vmem:[#allocation9 + $0x4f8] sm:$0xff]
    %v1445 = vld [vmem:[#allocation9 + $0x500] sm:$0xff]
    %v1446 = vld [vmem:[#allocation9 + $0x508] sm:$0xff]
    %v1447 = vld [vmem:[#allocation9 + $0x510] sm:$0xff]
    %v1448 = vld [vmem:[#allocation9 + $0x518] sm:$0xff]
    %v1449 = vld [vmem:[#allocation9 + $0x520] sm:$0xff]
    %v1450 = vld [vmem:[#allocation9 + $0x528] sm:$0xff]
    %v1451 = vld [vmem:[#allocation9 + $0x530] sm:$0xff]
    %v1452 = vld [vmem:[#allocation9 + $0x538] sm:$0xff]
    %v1453 = vld [vmem:[#allocation9 + $0x540] sm:$0xff]
    %v1454 = vld [vmem:[#allocation9 + $0x548] sm:$0xff]
    %v1455 = vld [vmem:[#allocation9 + $0x550] sm:$0xff]
    %v1456 = vld [vmem:[#allocation9 + $0x558] sm:$0xff]
    %v1457 = vld [vmem:[#allocation9 + $0x560] sm:$0xff]
    %v1458 = vld [vmem:[#allocation9 + $0x568] sm:$0xff]
    %v1459 = vld [vmem:[#allocation9 + $0x570] sm:$0xff]
    %v1460 = vld [vmem:[#allocation9 + $0x578] sm:$0xff]
    %v1461 = vld [vmem:[#allocation9 + $0x580] sm:$0xff]
    %v1462 = vld [vmem:[#allocation9 + $0x588] sm:$0xff]
    %v1463 = vld [vmem:[#allocation9 + $0x590] sm:$0xff]
    %v1464 = vld [vmem:[#allocation9 + $0x598] sm:$0xff]
    %v1465 = vld [vmem:[#allocation9 + $0x5a0] sm:$0xff]
    %v1466 = vld [vmem:[#allocation9 + $0x5a8] sm:$0xff]
    %v1467 = vld [vmem:[#allocation9 + $0x5b0] sm:$0xff]
    %v1468 = vld [vmem:[#allocation9 + $0x5b8] sm:$0xff]
    %v1469 = vld [vmem:[#allocation9 + $0x5c0] sm:$0xff]
    %v1470 = vld [vmem:[#allocation9 + $0x5c8] sm:$0xff]
    %v1471 = vld [vmem:[#allocation9 + $0x5d0] sm:$0xff]
    %v1472 = vld [vmem:[#allocation9 + $0x5d8] sm:$0xff]
    %v1473 = vld [vmem:[#allocation9 + $0x5e0] sm:$0xff]
    %v1474 = vld [vmem:[#allocation9 + $0x5e8] sm:$0xff]
    %v1475 = vld [vmem:[#allocation9 + $0x5f0] sm:$0xff]
    %v1476 = vld [vmem:[#allocation9 + $0x5f8] sm:$0xff]
    %v1477 = vld [vmem:[#allocation9 + $0x600] sm:$0xff]
    %v1478 = vld [vmem:[#allocation9 + $0x608] sm:$0xff]
    %v1479 = vld [vmem:[#allocation9 + $0x610] sm:$0xff]
    %v1480 = vld [vmem:[#allocation9 + $0x618] sm:$0xff]
    %v1481 = vld [vmem:[#allocation9 + $0x620] sm:$0xff]
    %v1482 = vld [vmem:[#allocation9 + $0x628] sm:$0xff]
    %v1483 = vld [vmem:[#allocation9 + $0x630] sm:$0xff]
    %v1484 = vld [vmem:[#allocation9 + $0x638] sm:$0xff]
    %v1485 = vld [vmem:[#allocation9 + $0x640] sm:$0xff]
    %v1486 = vld [vmem:[#allocation9 + $0x648] sm:$0xff]
    %v1487 = vld [vmem:[#allocation9 + $0x650] sm:$0xff]
    %v1488 = vld [vmem:[#allocation9 + $0x658] sm:$0xff]
    %v1489 = vld [vmem:[#allocation9 + $0x660] sm:$0xff]
    %v1490 = vld [vmem:[#allocation9 + $0x668] sm:$0xff]
    %v1491 = vld [vmem:[#allocation9 + $0x670] sm:$0xff]
    %v1492 = vld [vmem:[#allocation9 + $0x678] sm:$0xff]
    %v1493 = vld [vmem:[#allocation9 + $0x680] sm:$0xff]
    %v1494 = vld [vmem:[#allocation9 + $0x688] sm:$0xff]
    %v1495 = vld [vmem:[#allocation9 + $0x690] sm:$0xff]
    %v1496 = vld [vmem:[#allocation9 + $0x698] sm:$0xff]
    %v1497 = vld [vmem:[#allocation9 + $0x6a0] sm:$0xff]
    %v1498 = vld [vmem:[#allocation9 + $0x6a8] sm:$0xff]
    %v1499 = vld [vmem:[#allocation9 + $0x6b0] sm:$0xff]
    %v1500 = vld [vmem:[#allocation9 + $0x6b8] sm:$0xff]
    %v1501 = vld [vmem:[#allocation9 + $0x6c0] sm:$0xff]
    %v1502 = vld [vmem:[#allocation9 + $0x6c8] sm:$0xff]
    %v1503 = vld [vmem:[#allocation9 + $0x6d0] sm:$0xff]
    %v1504 = vld [vmem:[#allocation9 + $0x6d8] sm:$0xff]
    %v1505 = vld [vmem:[#allocation9 + $0x6e0] sm:$0xff]
    %v1506 = vld [vmem:[#allocation9 + $0x6e8] sm:$0xff]
    %v1507 = vld [vmem:[#allocation9 + $0x6f0] sm:$0xff]
    %v1508 = vld [vmem:[#allocation9 + $0x6f8] sm:$0xff]
    %v1509 = vld [vmem:[#allocation9 + $0x700] sm:$0xff]
    %v1510 = vld [vmem:[#allocation9 + $0x708] sm:$0xff]
    %v1511 = vld [vmem:[#allocation9 + $0x710] sm:$0xff]
    %v1512 = vld [vmem:[#allocation9 + $0x718] sm:$0xff]
    %v1513 = vld [vmem:[#allocation9 + $0x720] sm:$0xff]
    %v1514 = vld [vmem:[#allocation9 + $0x728] sm:$0xff]
    %v1515 = vld [vmem:[#allocation9 + $0x730] sm:$0xff]
    %v1516 = vld [vmem:[#allocation9 + $0x738] sm:$0xff]
    %v1517 = vld [vmem:[#allocation9 + $0x740] sm:$0xff]
    %v1518 = vld [vmem:[#allocation9 + $0x748] sm:$0xff]
    %v1519 = vld [vmem:[#allocation9 + $0x750] sm:$0xff]
    %v1520 = vld [vmem:[#allocation9 + $0x758] sm:$0xff]
    %v1521 = vld [vmem:[#allocation9 + $0x760] sm:$0xff]
    %v1522 = vld [vmem:[#allocation9 + $0x768] sm:$0xff]
    %v1523 = vld [vmem:[#allocation9 + $0x770] sm:$0xff]
    %v1524 = vld [vmem:[#allocation9 + $0x778] sm:$0xff]
    %v1525 = vld [vmem:[#allocation9 + $0x780] sm:$0xff]
    %v1526 = vld [vmem:[#allocation9 + $0x788] sm:$0xff]
    %v1527 = vld [vmem:[#allocation9 + $0x790] sm:$0xff]
    %v1528 = vld [vmem:[#allocation9 + $0x798] sm:$0xff]
    %v1529 = vld [vmem:[#allocation9 + $0x7a0] sm:$0xff]
    %v1530 = vld [vmem:[#allocation9 + $0x7a8] sm:$0xff]
    %v1531 = vld [vmem:[#allocation9 + $0x7b0] sm:$0xff]
    %v1532 = vld [vmem:[#allocation9 + $0x7b8] sm:$0xff]
    %v1533 = vld [vmem:[#allocation9 + $0x7c0] sm:$0xff]
    %v1534 = vld [vmem:[#allocation9 + $0x7c8] sm:$0xff]
    %v1535 = vld [vmem:[#allocation9 + $0x7d0] sm:$0xff]
    %v1536 = vld [vmem:[#allocation9 + $0x7d8] sm:$0xff]
    %v1537 = vld [vmem:[#allocation9 + $0x7e0] sm:$0xff]
    %v1538 = vld [vmem:[#allocation9 + $0x7e8] sm:$0xff]
    %v1539 = vld [vmem:[#allocation9 + $0x7f0] sm:$0xff]
    %v1540 = vld [vmem:[#allocation9 + $0x7f8] sm:$0xff]
    %s1541 = scalar_lea.vmem [#allocation10], 1
    %v1542 = vld [vmem:[%s1541] ss:$4 sm:$0xf]
    %v1544 = vlaneseq
    %v1545 = vshrl.u32 %v1544, 7
    %v1546 = vsub.s32 0, %v1545
    %v1547 = vrot.slane %v1542, %v1546
    %v1548 = vlaneseq
    %v1549 = vshrl.u32 %v1548, 7
    %v1550 = vsub.s32 1, %v1549
    %v1551 = vrot.slane %v1542, %v1550
    %v1552 = vlaneseq
    %v1553 = vshrl.u32 %v1552, 7
    %v1554 = vsub.s32 2, %v1553
    %v1555 = vrot.slane %v1542, %v1554
    %v1556 = vlaneseq
    %v1557 = vshrl.u32 %v1556, 7
    %v1558 = vsub.s32 3, %v1557
    %v1559 = vrot.slane %v1542, %v1558
    %v1820 = vunpack.c.l.b16 %v1285
    %v1821 = vunpack.c.h.b16 %v1285
    %v1822 = vunpack.c.l.b16 %v1286
    %v1823 = vunpack.c.h.b16 %v1286
    %v1824 = vunpack.c.l.b16 %v1287
    %v1825 = vunpack.c.h.b16 %v1287
    %v1826 = vunpack.c.l.b16 %v1288
    %v1827 = vunpack.c.h.b16 %v1288
    %v1828 = vunpack.c.l.b16 %v1289
    %v1829 = vunpack.c.h.b16 %v1289
    %v1830 = vunpack.c.l.b16 %v1290
    %v1831 = vunpack.c.h.b16 %v1290
    %v1832 = vunpack.c.l.b16 %v1291
    %v1833 = vunpack.c.h.b16 %v1291
    %v1834 = vunpack.c.l.b16 %v1292
    %v1835 = vunpack.c.h.b16 %v1292
    %v1836 = vunpack.c.l.b16 %v1293
    %v1837 = vunpack.c.h.b16 %v1293
    %v1838 = vunpack.c.l.b16 %v1294
    %v1839 = vunpack.c.h.b16 %v1294
    %v1840 = vunpack.c.l.b16 %v1295
    %v1841 = vunpack.c.h.b16 %v1295
    %v1842 = vunpack.c.l.b16 %v1296
    %v1843 = vunpack.c.h.b16 %v1296
    %v1844 = vunpack.c.l.b16 %v1297
    %v1845 = vunpack.c.h.b16 %v1297
    %v1846 = vunpack.c.l.b16 %v1298
    %v1847 = vunpack.c.h.b16 %v1298
    %v1848 = vunpack.c.l.b16 %v1299
    %v1849 = vunpack.c.h.b16 %v1299
    %v1850 = vunpack.c.l.b16 %v1300
    %v1851 = vunpack.c.h.b16 %v1300
    %v1852 = vunpack.c.l.b16 %v1301
    %v1853 = vunpack.c.h.b16 %v1301
    %v1854 = vunpack.c.l.b16 %v1302
    %v1855 = vunpack.c.h.b16 %v1302
    %v1856 = vunpack.c.l.b16 %v1303
    %v1857 = vunpack.c.h.b16 %v1303
    %v1858 = vunpack.c.l.b16 %v1304
    %v1859 = vunpack.c.h.b16 %v1304
    %v1860 = vunpack.c.l.b16 %v1305
    %v1861 = vunpack.c.h.b16 %v1305
    %v1862 = vunpack.c.l.b16 %v1306
    %v1863 = vunpack.c.h.b16 %v1306
    %v1864 = vunpack.c.l.b16 %v1307
    %v1865 = vunpack.c.h.b16 %v1307
    %v1866 = vunpack.c.l.b16 %v1308
    %v1867 = vunpack.c.h.b16 %v1308
    %v1868 = vunpack.c.l.b16 %v1309
    %v1869 = vunpack.c.h.b16 %v1309
    %v1870 = vunpack.c.l.b16 %v1310
    %v1871 = vunpack.c.h.b16 %v1310
    %v1872 = vunpack.c.l.b16 %v1311
    %v1873 = vunpack.c.h.b16 %v1311
    %v1874 = vunpack.c.l.b16 %v1312
    %v1875 = vunpack.c.h.b16 %v1312
    %v1876 = vunpack.c.l.b16 %v1313
    %v1877 = vunpack.c.h.b16 %v1313
    %v1878 = vunpack.c.l.b16 %v1314
    %v1879 = vunpack.c.h.b16 %v1314
    %v1880 = vunpack.c.l.b16 %v1315
    %v1881 = vunpack.c.h.b16 %v1315
    %v1882 = vunpack.c.l.b16 %v1316
    %v1883 = vunpack.c.h.b16 %v1316
    %v1884 = vunpack.c.l.b16 %v1317
    %v1885 = vunpack.c.h.b16 %v1317
    %v1886 = vunpack.c.l.b16 %v1318
    %v1887 = vunpack.c.h.b16 %v1318
    %v1888 = vunpack.c.l.b16 %v1319
    %v1889 = vunpack.c.h.b16 %v1319
    %v1890 = vunpack.c.l.b16 %v1320
    %v1891 = vunpack.c.h.b16 %v1320
    %v1892 = vunpack.c.l.b16 %v1321
    %v1893 = vunpack.c.h.b16 %v1321
    %v1894 = vunpack.c.l.b16 %v1322
    %v1895 = vunpack.c.h.b16 %v1322
    %v1896 = vunpack.c.l.b16 %v1323
    %v1897 = vunpack.c.h.b16 %v1323
    %v1898 = vunpack.c.l.b16 %v1324
    %v1899 = vunpack.c.h.b16 %v1324
    %v1900 = vunpack.c.l.b16 %v1325
    %v1901 = vunpack.c.h.b16 %v1325
    %v1902 = vunpack.c.l.b16 %v1326
    %v1903 = vunpack.c.h.b16 %v1326
    %v1904 = vunpack.c.l.b16 %v1327
    %v1905 = vunpack.c.h.b16 %v1327
    %v1906 = vunpack.c.l.b16 %v1328
    %v1907 = vunpack.c.h.b16 %v1328
    %v1908 = vunpack.c.l.b16 %v1329
    %v1909 = vunpack.c.h.b16 %v1329
    %v1910 = vunpack.c.l.b16 %v1330
    %v1911 = vunpack.c.h.b16 %v1330
    %v1912 = vunpack.c.l.b16 %v1331
    %v1913 = vunpack.c.h.b16 %v1331
    %v1914 = vunpack.c.l.b16 %v1332
    %v1915 = vunpack.c.h.b16 %v1332
    %v1916 = vunpack.c.l.b16 %v1333
    %v1917 = vunpack.c.h.b16 %v1333
    %v1918 = vunpack.c.l.b16 %v1334
    %v1919 = vunpack.c.h.b16 %v1334
    %v1920 = vunpack.c.l.b16 %v1335
    %v1921 = vunpack.c.h.b16 %v1335
    %v1922 = vunpack.c.l.b16 %v1336
    %v1923 = vunpack.c.h.b16 %v1336
    %v1924 = vunpack.c.l.b16 %v1337
    %v1925 = vunpack.c.h.b16 %v1337
    %v1926 = vunpack.c.l.b16 %v1338
    %v1927 = vunpack.c.h.b16 %v1338
    %v1928 = vunpack.c.l.b16 %v1339
    %v1929 = vunpack.c.h.b16 %v1339
    %v1930 = vunpack.c.l.b16 %v1340
    %v1931 = vunpack.c.h.b16 %v1340
    %v1932 = vunpack.c.l.b16 %v1341
    %v1933 = vunpack.c.h.b16 %v1341
    %v1934 = vunpack.c.l.b16 %v1342
    %v1935 = vunpack.c.h.b16 %v1342
    %v1936 = vunpack.c.l.b16 %v1343
    %v1937 = vunpack.c.h.b16 %v1343
    %v1938 = vunpack.c.l.b16 %v1344
    %v1939 = vunpack.c.h.b16 %v1344
    %v1940 = vunpack.c.l.b16 %v1345
    %v1941 = vunpack.c.h.b16 %v1345
    %v1942 = vunpack.c.l.b16 %v1346
    %v1943 = vunpack.c.h.b16 %v1346
    %v1944 = vunpack.c.l.b16 %v1347
    %v1945 = vunpack.c.h.b16 %v1347
    %v1946 = vunpack.c.l.b16 %v1348
    %v1947 = vunpack.c.h.b16 %v1348
    %v1948 = vunpack.c.l.b16 %v1349
    %v1949 = vunpack.c.h.b16 %v1349
    %v1950 = vunpack.c.l.b16 %v1350
    %v1951 = vunpack.c.h.b16 %v1350
    %v1952 = vunpack.c.l.b16 %v1351
    %v1953 = vunpack.c.h.b16 %v1351
    %v1954 = vunpack.c.l.b16 %v1352
    %v1955 = vunpack.c.h.b16 %v1352
    %v1956 = vunpack.c.l.b16 %v1353
    %v1957 = vunpack.c.h.b16 %v1353
    %v1958 = vunpack.c.l.b16 %v1354
    %v1959 = vunpack.c.h.b16 %v1354
    %v1960 = vunpack.c.l.b16 %v1355
    %v1961 = vunpack.c.h.b16 %v1355
    %v1962 = vunpack.c.l.b16 %v1356
    %v1963 = vunpack.c.h.b16 %v1356
    %v1964 = vunpack.c.l.b16 %v1357
    %v1965 = vunpack.c.h.b16 %v1357
    %v1966 = vunpack.c.l.b16 %v1358
    %v1967 = vunpack.c.h.b16 %v1358
    %v1968 = vunpack.c.l.b16 %v1359
    %v1969 = vunpack.c.h.b16 %v1359
    %v1970 = vunpack.c.l.b16 %v1360
    %v1971 = vunpack.c.h.b16 %v1360
    %v1972 = vunpack.c.l.b16 %v1361
    %v1973 = vunpack.c.h.b16 %v1361
    %v1974 = vunpack.c.l.b16 %v1362
    %v1975 = vunpack.c.h.b16 %v1362
    %v1976 = vunpack.c.l.b16 %v1363
    %v1977 = vunpack.c.h.b16 %v1363
    %v1978 = vunpack.c.l.b16 %v1364
    %v1979 = vunpack.c.h.b16 %v1364
    %v1980 = vunpack.c.l.b16 %v1365
    %v1981 = vunpack.c.h.b16 %v1365
    %v1982 = vunpack.c.l.b16 %v1366
    %v1983 = vunpack.c.h.b16 %v1366
    %v1984 = vunpack.c.l.b16 %v1367
    %v1985 = vunpack.c.h.b16 %v1367
    %v1986 = vunpack.c.l.b16 %v1368
    %v1987 = vunpack.c.h.b16 %v1368
    %v1988 = vunpack.c.l.b16 %v1369
    %v1989 = vunpack.c.h.b16 %v1369
    %v1990 = vunpack.c.l.b16 %v1370
    %v1991 = vunpack.c.h.b16 %v1370
    %v1992 = vunpack.c.l.b16 %v1371
    %v1993 = vunpack.c.h.b16 %v1371
    %v1994 = vunpack.c.l.b16 %v1372
    %v1995 = vunpack.c.h.b16 %v1372
    %v1996 = vunpack.c.l.b16 %v1373
    %v1997 = vunpack.c.h.b16 %v1373
    %v1998 = vunpack.c.l.b16 %v1374
    %v1999 = vunpack.c.h.b16 %v1374
    %v2000 = vunpack.c.l.b16 %v1375
    %v2001 = vunpack.c.h.b16 %v1375
    %v2002 = vunpack.c.l.b16 %v1376
    %v2003 = vunpack.c.h.b16 %v1376
    %v2004 = vunpack.c.l.b16 %v1377
    %v2005 = vunpack.c.h.b16 %v1377
    %v2006 = vunpack.c.l.b16 %v1378
    %v2007 = vunpack.c.h.b16 %v1378
    %v2008 = vunpack.c.l.b16 %v1379
    %v2009 = vunpack.c.h.b16 %v1379
    %v2010 = vunpack.c.l.b16 %v1380
    %v2011 = vunpack.c.h.b16 %v1380
    %v2012 = vunpack.c.l.b16 %v1381
    %v2013 = vunpack.c.h.b16 %v1381
    %v2014 = vunpack.c.l.b16 %v1382
    %v2015 = vunpack.c.h.b16 %v1382
    %v2016 = vunpack.c.l.b16 %v1383
    %v2017 = vunpack.c.h.b16 %v1383
    %v2018 = vunpack.c.l.b16 %v1384
    %v2019 = vunpack.c.h.b16 %v1384
    %v2020 = vunpack.c.l.b16 %v1385
    %v2021 = vunpack.c.h.b16 %v1385
    %v2022 = vunpack.c.l.b16 %v1386
    %v2023 = vunpack.c.h.b16 %v1386
    %v2024 = vunpack.c.l.b16 %v1387
    %v2025 = vunpack.c.h.b16 %v1387
    %v2026 = vunpack.c.l.b16 %v1388
    %v2027 = vunpack.c.h.b16 %v1388
    %v2028 = vunpack.c.l.b16 %v1389
    %v2029 = vunpack.c.h.b16 %v1389
    %v2030 = vunpack.c.l.b16 %v1390
    %v2031 = vunpack.c.h.b16 %v1390
    %v2032 = vunpack.c.l.b16 %v1391
    %v2033 = vunpack.c.h.b16 %v1391
    %v2034 = vunpack.c.l.b16 %v1392
    %v2035 = vunpack.c.h.b16 %v1392
    %v2036 = vunpack.c.l.b16 %v1393
    %v2037 = vunpack.c.h.b16 %v1393
    %v2038 = vunpack.c.l.b16 %v1394
    %v2039 = vunpack.c.h.b16 %v1394
    %v2040 = vunpack.c.l.b16 %v1395
    %v2041 = vunpack.c.h.b16 %v1395
    %v2042 = vunpack.c.l.b16 %v1396
    %v2043 = vunpack.c.h.b16 %v1396
    %v2044 = vunpack.c.l.b16 %v1397
    %v2045 = vunpack.c.h.b16 %v1397
    %v2046 = vunpack.c.l.b16 %v1398
    %v2047 = vunpack.c.h.b16 %v1398
    %v2048 = vunpack.c.l.b16 %v1399
    %v2049 = vunpack.c.h.b16 %v1399
    %v2050 = vunpack.c.l.b16 %v1400
    %v2051 = vunpack.c.h.b16 %v1400
    %v2052 = vunpack.c.l.b16 %v1401
    %v2053 = vunpack.c.h.b16 %v1401
    %v2054 = vunpack.c.l.b16 %v1402
    %v2055 = vunpack.c.h.b16 %v1402
    %v2056 = vunpack.c.l.b16 %v1403
    %v2057 = vunpack.c.h.b16 %v1403
    %v2058 = vunpack.c.l.b16 %v1404
    %v2059 = vunpack.c.h.b16 %v1404
    %v2060 = vunpack.c.l.b16 %v1405
    %v2061 = vunpack.c.h.b16 %v1405
    %v2062 = vunpack.c.l.b16 %v1406
    %v2063 = vunpack.c.h.b16 %v1406
    %v2064 = vunpack.c.l.b16 %v1407
    %v2065 = vunpack.c.h.b16 %v1407
    %v2066 = vunpack.c.l.b16 %v1408
    %v2067 = vunpack.c.h.b16 %v1408
    %v2068 = vunpack.c.l.b16 %v1409
    %v2069 = vunpack.c.h.b16 %v1409
    %v2070 = vunpack.c.l.b16 %v1410
    %v2071 = vunpack.c.h.b16 %v1410
    %v2072 = vunpack.c.l.b16 %v1411
    %v2073 = vunpack.c.h.b16 %v1411
    %v2074 = vunpack.c.l.b16 %v1412
    %v2075 = vunpack.c.h.b16 %v1412
    %v2076 = vunpack.c.l.b16 %v1413
    %v2077 = vunpack.c.h.b16 %v1413
    %v2078 = vunpack.c.l.b16 %v1414
    %v2079 = vunpack.c.h.b16 %v1414
    %v2080 = vunpack.c.l.b16 %v1415
    %v2081 = vunpack.c.h.b16 %v1415
    %v2082 = vunpack.c.l.b16 %v1416
    %v2083 = vunpack.c.h.b16 %v1416
    %v2084 = vunpack.c.l.b16 %v1417
    %v2085 = vunpack.c.h.b16 %v1417
    %v2086 = vunpack.c.l.b16 %v1418
    %v2087 = vunpack.c.h.b16 %v1418
    %v2088 = vunpack.c.l.b16 %v1419
    %v2089 = vunpack.c.h.b16 %v1419
    %v2090 = vunpack.c.l.b16 %v1420
    %v2091 = vunpack.c.h.b16 %v1420
    %v2092 = vunpack.c.l.b16 %v1421
    %v2093 = vunpack.c.h.b16 %v1421
    %v2094 = vunpack.c.l.b16 %v1422
    %v2095 = vunpack.c.h.b16 %v1422
    %v2096 = vunpack.c.l.b16 %v1423
    %v2097 = vunpack.c.h.b16 %v1423
    %v2098 = vunpack.c.l.b16 %v1424
    %v2099 = vunpack.c.h.b16 %v1424
    %v2100 = vunpack.c.l.b16 %v1425
    %v2101 = vunpack.c.h.b16 %v1425
    %v2102 = vunpack.c.l.b16 %v1426
    %v2103 = vunpack.c.h.b16 %v1426
    %v2104 = vunpack.c.l.b16 %v1427
    %v2105 = vunpack.c.h.b16 %v1427
    %v2106 = vunpack.c.l.b16 %v1428
    %v2107 = vunpack.c.h.b16 %v1428
    %v2108 = vunpack.c.l.b16 %v1429
    %v2109 = vunpack.c.h.b16 %v1429
    %v2110 = vunpack.c.l.b16 %v1430
    %v2111 = vunpack.c.h.b16 %v1430
    %v2112 = vunpack.c.l.b16 %v1431
    %v2113 = vunpack.c.h.b16 %v1431
    %v2114 = vunpack.c.l.b16 %v1432
    %v2115 = vunpack.c.h.b16 %v1432
    %v2116 = vunpack.c.l.b16 %v1433
    %v2117 = vunpack.c.h.b16 %v1433
    %v2118 = vunpack.c.l.b16 %v1434
    %v2119 = vunpack.c.h.b16 %v1434
    %v2120 = vunpack.c.l.b16 %v1435
    %v2121 = vunpack.c.h.b16 %v1435
    %v2122 = vunpack.c.l.b16 %v1436
    %v2123 = vunpack.c.h.b16 %v1436
    %v2124 = vunpack.c.l.b16 %v1437
    %v2125 = vunpack.c.h.b16 %v1437
    %v2126 = vunpack.c.l.b16 %v1438
    %v2127 = vunpack.c.h.b16 %v1438
    %v2128 = vunpack.c.l.b16 %v1439
    %v2129 = vunpack.c.h.b16 %v1439
    %v2130 = vunpack.c.l.b16 %v1440
    %v2131 = vunpack.c.h.b16 %v1440
    %v2132 = vunpack.c.l.b16 %v1441
    %v2133 = vunpack.c.h.b16 %v1441
    %v2134 = vunpack.c.l.b16 %v1442
    %v2135 = vunpack.c.h.b16 %v1442
    %v2136 = vunpack.c.l.b16 %v1443
    %v2137 = vunpack.c.h.b16 %v1443
    %v2138 = vunpack.c.l.b16 %v1444
    %v2139 = vunpack.c.h.b16 %v1444
    %v2140 = vunpack.c.l.b16 %v1445
    %v2141 = vunpack.c.h.b16 %v1445
    %v2142 = vunpack.c.l.b16 %v1446
    %v2143 = vunpack.c.h.b16 %v1446
    %v2144 = vunpack.c.l.b16 %v1447
    %v2145 = vunpack.c.h.b16 %v1447
    %v2146 = vunpack.c.l.b16 %v1448
    %v2147 = vunpack.c.h.b16 %v1448
    %v2148 = vunpack.c.l.b16 %v1449
    %v2149 = vunpack.c.h.b16 %v1449
    %v2150 = vunpack.c.l.b16 %v1450
    %v2151 = vunpack.c.h.b16 %v1450
    %v2152 = vunpack.c.l.b16 %v1451
    %v2153 = vunpack.c.h.b16 %v1451
    %v2154 = vunpack.c.l.b16 %v1452
    %v2155 = vunpack.c.h.b16 %v1452
    %v2156 = vunpack.c.l.b16 %v1453
    %v2157 = vunpack.c.h.b16 %v1453
    %v2158 = vunpack.c.l.b16 %v1454
    %v2159 = vunpack.c.h.b16 %v1454
    %v2160 = vunpack.c.l.b16 %v1455
    %v2161 = vunpack.c.h.b16 %v1455
    %v2162 = vunpack.c.l.b16 %v1456
    %v2163 = vunpack.c.h.b16 %v1456
    %v2164 = vunpack.c.l.b16 %v1457
    %v2165 = vunpack.c.h.b16 %v1457
    %v2166 = vunpack.c.l.b16 %v1458
    %v2167 = vunpack.c.h.b16 %v1458
    %v2168 = vunpack.c.l.b16 %v1459
    %v2169 = vunpack.c.h.b16 %v1459
    %v2170 = vunpack.c.l.b16 %v1460
    %v2171 = vunpack.c.h.b16 %v1460
    %v2172 = vunpack.c.l.b16 %v1461
    %v2173 = vunpack.c.h.b16 %v1461
    %v2174 = vunpack.c.l.b16 %v1462
    %v2175 = vunpack.c.h.b16 %v1462
    %v2176 = vunpack.c.l.b16 %v1463
    %v2177 = vunpack.c.h.b16 %v1463
    %v2178 = vunpack.c.l.b16 %v1464
    %v2179 = vunpack.c.h.b16 %v1464
    %v2180 = vunpack.c.l.b16 %v1465
    %v2181 = vunpack.c.h.b16 %v1465
    %v2182 = vunpack.c.l.b16 %v1466
    %v2183 = vunpack.c.h.b16 %v1466
    %v2184 = vunpack.c.l.b16 %v1467
    %v2185 = vunpack.c.h.b16 %v1467
    %v2186 = vunpack.c.l.b16 %v1468
    %v2187 = vunpack.c.h.b16 %v1468
    %v2188 = vunpack.c.l.b16 %v1469
    %v2189 = vunpack.c.h.b16 %v1469
    %v2190 = vunpack.c.l.b16 %v1470
    %v2191 = vunpack.c.h.b16 %v1470
    %v2192 = vunpack.c.l.b16 %v1471
    %v2193 = vunpack.c.h.b16 %v1471
    %v2194 = vunpack.c.l.b16 %v1472
    %v2195 = vunpack.c.h.b16 %v1472
    %v2196 = vunpack.c.l.b16 %v1473
    %v2197 = vunpack.c.h.b16 %v1473
    %v2198 = vunpack.c.l.b16 %v1474
    %v2199 = vunpack.c.h.b16 %v1474
    %v2200 = vunpack.c.l.b16 %v1475
    %v2201 = vunpack.c.h.b16 %v1475
    %v2202 = vunpack.c.l.b16 %v1476
    %v2203 = vunpack.c.h.b16 %v1476
    %v2204 = vunpack.c.l.b16 %v1477
    %v2205 = vunpack.c.h.b16 %v1477
    %v2206 = vunpack.c.l.b16 %v1478
    %v2207 = vunpack.c.h.b16 %v1478
    %v2208 = vunpack.c.l.b16 %v1479
    %v2209 = vunpack.c.h.b16 %v1479
    %v2210 = vunpack.c.l.b16 %v1480
    %v2211 = vunpack.c.h.b16 %v1480
    %v2212 = vunpack.c.l.b16 %v1481
    %v2213 = vunpack.c.h.b16 %v1481
    %v2214 = vunpack.c.l.b16 %v1482
    %v2215 = vunpack.c.h.b16 %v1482
    %v2216 = vunpack.c.l.b16 %v1483
    %v2217 = vunpack.c.h.b16 %v1483
    %v2218 = vunpack.c.l.b16 %v1484
    %v2219 = vunpack.c.h.b16 %v1484
    %v2220 = vunpack.c.l.b16 %v1485
    %v2221 = vunpack.c.h.b16 %v1485
    %v2222 = vunpack.c.l.b16 %v1486
    %v2223 = vunpack.c.h.b16 %v1486
    %v2224 = vunpack.c.l.b16 %v1487
    %v2225 = vunpack.c.h.b16 %v1487
    %v2226 = vunpack.c.l.b16 %v1488
    %v2227 = vunpack.c.h.b16 %v1488
    %v2228 = vunpack.c.l.b16 %v1489
    %v2229 = vunpack.c.h.b16 %v1489
    %v2230 = vunpack.c.l.b16 %v1490
    %v2231 = vunpack.c.h.b16 %v1490
    %v2232 = vunpack.c.l.b16 %v1491
    %v2233 = vunpack.c.h.b16 %v1491
    %v2234 = vunpack.c.l.b16 %v1492
    %v2235 = vunpack.c.h.b16 %v1492
    %v2236 = vunpack.c.l.b16 %v1493
    %v2237 = vunpack.c.h.b16 %v1493
    %v2238 = vunpack.c.l.b16 %v1494
    %v2239 = vunpack.c.h.b16 %v1494
    %v2240 = vunpack.c.l.b16 %v1495
    %v2241 = vunpack.c.h.b16 %v1495
    %v2242 = vunpack.c.l.b16 %v1496
    %v2243 = vunpack.c.h.b16 %v1496
    %v2244 = vunpack.c.l.b16 %v1497
    %v2245 = vunpack.c.h.b16 %v1497
    %v2246 = vunpack.c.l.b16 %v1498
    %v2247 = vunpack.c.h.b16 %v1498
    %v2248 = vunpack.c.l.b16 %v1499
    %v2249 = vunpack.c.h.b16 %v1499
    %v2250 = vunpack.c.l.b16 %v1500
    %v2251 = vunpack.c.h.b16 %v1500
    %v2252 = vunpack.c.l.b16 %v1501
    %v2253 = vunpack.c.h.b16 %v1501
    %v2254 = vunpack.c.l.b16 %v1502
    %v2255 = vunpack.c.h.b16 %v1502
    %v2256 = vunpack.c.l.b16 %v1503
    %v2257 = vunpack.c.h.b16 %v1503
    %v2258 = vunpack.c.l.b16 %v1504
    %v2259 = vunpack.c.h.b16 %v1504
    %v2260 = vunpack.c.l.b16 %v1505
    %v2261 = vunpack.c.h.b16 %v1505
    %v2262 = vunpack.c.l.b16 %v1506
    %v2263 = vunpack.c.h.b16 %v1506
    %v2264 = vunpack.c.l.b16 %v1507
    %v2265 = vunpack.c.h.b16 %v1507
    %v2266 = vunpack.c.l.b16 %v1508
    %v2267 = vunpack.c.h.b16 %v1508
    %v2268 = vunpack.c.l.b16 %v1509
    %v2269 = vunpack.c.h.b16 %v1509
    %v2270 = vunpack.c.l.b16 %v1510
    %v2271 = vunpack.c.h.b16 %v1510
    %v2272 = vunpack.c.l.b16 %v1511
    %v2273 = vunpack.c.h.b16 %v1511
    %v2274 = vunpack.c.l.b16 %v1512
    %v2275 = vunpack.c.h.b16 %v1512
    %v2276 = vunpack.c.l.b16 %v1513
    %v2277 = vunpack.c.h.b16 %v1513
    %v2278 = vunpack.c.l.b16 %v1514
    %v2279 = vunpack.c.h.b16 %v1514
    %v2280 = vunpack.c.l.b16 %v1515
    %v2281 = vunpack.c.h.b16 %v1515
    %v2282 = vunpack.c.l.b16 %v1516
    %v2283 = vunpack.c.h.b16 %v1516
    %v2284 = vunpack.c.l.b16 %v1517
    %v2285 = vunpack.c.h.b16 %v1517
    %v2286 = vunpack.c.l.b16 %v1518
    %v2287 = vunpack.c.h.b16 %v1518
    %v2288 = vunpack.c.l.b16 %v1519
    %v2289 = vunpack.c.h.b16 %v1519
    %v2290 = vunpack.c.l.b16 %v1520
    %v2291 = vunpack.c.h.b16 %v1520
    %v2292 = vunpack.c.l.b16 %v1521
    %v2293 = vunpack.c.h.b16 %v1521
    %v2294 = vunpack.c.l.b16 %v1522
    %v2295 = vunpack.c.h.b16 %v1522
    %v2296 = vunpack.c.l.b16 %v1523
    %v2297 = vunpack.c.h.b16 %v1523
    %v2298 = vunpack.c.l.b16 %v1524
    %v2299 = vunpack.c.h.b16 %v1524
    %v2300 = vunpack.c.l.b16 %v1525
    %v2301 = vunpack.c.h.b16 %v1525
    %v2302 = vunpack.c.l.b16 %v1526
    %v2303 = vunpack.c.h.b16 %v1526
    %v2304 = vunpack.c.l.b16 %v1527
    %v2305 = vunpack.c.h.b16 %v1527
    %v2306 = vunpack.c.l.b16 %v1528
    %v2307 = vunpack.c.h.b16 %v1528
    %v2308 = vunpack.c.l.b16 %v1529
    %v2309 = vunpack.c.h.b16 %v1529
    %v2310 = vunpack.c.l.b16 %v1530
    %v2311 = vunpack.c.h.b16 %v1530
    %v2312 = vunpack.c.l.b16 %v1531
    %v2313 = vunpack.c.h.b16 %v1531
    %v2314 = vunpack.c.l.b16 %v1532
    %v2315 = vunpack.c.h.b16 %v1532
    %v2316 = vunpack.c.l.b16 %v1533
    %v2317 = vunpack.c.h.b16 %v1533
    %v2318 = vunpack.c.l.b16 %v1534
    %v2319 = vunpack.c.h.b16 %v1534
    %v2320 = vunpack.c.l.b16 %v1535
    %v2321 = vunpack.c.h.b16 %v1535
    %v2322 = vunpack.c.l.b16 %v1536
    %v2323 = vunpack.c.h.b16 %v1536
    %v2324 = vunpack.c.l.b16 %v1537
    %v2325 = vunpack.c.h.b16 %v1537
    %v2326 = vunpack.c.l.b16 %v1538
    %v2327 = vunpack.c.h.b16 %v1538
    %v2328 = vunpack.c.l.b16 %v1539
    %v2329 = vunpack.c.h.b16 %v1539
    %v2330 = vunpack.c.l.b16 %v1540
    %v2331 = vunpack.c.h.b16 %v1540
    %v2332 = vpack.c.b16 %v1824, %v1820
    %v2333 = vpack.c.b16 %v1825, %v1821
    %v2334 = vpack.c.b16 %v1826, %v1822
    %v2335 = vpack.c.b16 %v1827, %v1823
    %v2336 = vpack.c.b16 %v1832, %v1828
    %v2337 = vpack.c.b16 %v1833, %v1829
    %v2338 = vpack.c.b16 %v1834, %v1830
    %v2339 = vpack.c.b16 %v1835, %v1831
    %v2340 = vpack.c.b16 %v1840, %v1836
    %v2341 = vpack.c.b16 %v1841, %v1837
    %v2342 = vpack.c.b16 %v1842, %v1838
    %v2343 = vpack.c.b16 %v1843, %v1839
    %v2344 = vpack.c.b16 %v1848, %v1844
    %v2345 = vpack.c.b16 %v1849, %v1845
    %v2346 = vpack.c.b16 %v1850, %v1846
    %v2347 = vpack.c.b16 %v1851, %v1847
    %v2348 = vpack.c.b16 %v1856, %v1852
    %v2349 = vpack.c.b16 %v1857, %v1853
    %v2350 = vpack.c.b16 %v1858, %v1854
    %v2351 = vpack.c.b16 %v1859, %v1855
    %v2352 = vpack.c.b16 %v1864, %v1860
    %v2353 = vpack.c.b16 %v1865, %v1861
    %v2354 = vpack.c.b16 %v1866, %v1862
    %v2355 = vpack.c.b16 %v1867, %v1863
    %v2356 = vpack.c.b16 %v1872, %v1868
    %v2357 = vpack.c.b16 %v1873, %v1869
    %v2358 = vpack.c.b16 %v1874, %v1870
    %v2359 = vpack.c.b16 %v1875, %v1871
    %v2360 = vpack.c.b16 %v1880, %v1876
    %v2361 = vpack.c.b16 %v1881, %v1877
    %v2362 = vpack.c.b16 %v1882, %v1878
    %v2363 = vpack.c.b16 %v1883, %v1879
    %v2364 = vpack.c.b16 %v1888, %v1884
    %v2365 = vpack.c.b16 %v1889, %v1885
    %v2366 = vpack.c.b16 %v1890, %v1886
    %v2367 = vpack.c.b16 %v1891, %v1887
    %v2368 = vpack.c.b16 %v1896, %v1892
    %v2369 = vpack.c.b16 %v1897, %v1893
    %v2370 = vpack.c.b16 %v1898, %v1894
    %v2371 = vpack.c.b16 %v1899, %v1895
    %v2372 = vpack.c.b16 %v1904, %v1900
    %v2373 = vpack.c.b16 %v1905, %v1901
    %v2374 = vpack.c.b16 %v1906, %v1902
    %v2375 = vpack.c.b16 %v1907, %v1903
    %v2376 = vpack.c.b16 %v1912, %v1908
    %v2377 = vpack.c.b16 %v1913, %v1909
    %v2378 = vpack.c.b16 %v1914, %v1910
    %v2379 = vpack.c.b16 %v1915, %v1911
    %v2380 = vpack.c.b16 %v1920, %v1916
    %v2381 = vpack.c.b16 %v1921, %v1917
    %v2382 = vpack.c.b16 %v1922, %v1918
    %v2383 = vpack.c.b16 %v1923, %v1919
    %v2384 = vpack.c.b16 %v1928, %v1924
    %v2385 = vpack.c.b16 %v1929, %v1925
    %v2386 = vpack.c.b16 %v1930, %v1926
    %v2387 = vpack.c.b16 %v1931, %v1927
    %v2388 = vpack.c.b16 %v1936, %v1932
    %v2389 = vpack.c.b16 %v1937, %v1933
    %v2390 = vpack.c.b16 %v1938, %v1934
    %v2391 = vpack.c.b16 %v1939, %v1935
    %v2392 = vpack.c.b16 %v1944, %v1940
    %v2393 = vpack.c.b16 %v1945, %v1941
    %v2394 = vpack.c.b16 %v1946, %v1942
    %v2395 = vpack.c.b16 %v1947, %v1943
    %v2396 = vpack.c.b16 %v1952, %v1948
    %v2397 = vpack.c.b16 %v1953, %v1949
    %v2398 = vpack.c.b16 %v1954, %v1950
    %v2399 = vpack.c.b16 %v1955, %v1951
    %v2400 = vpack.c.b16 %v1960, %v1956
    %v2401 = vpack.c.b16 %v1961, %v1957
    %v2402 = vpack.c.b16 %v1962, %v1958
    %v2403 = vpack.c.b16 %v1963, %v1959
    %v2404 = vpack.c.b16 %v1968, %v1964
    %v2405 = vpack.c.b16 %v1969, %v1965
    %v2406 = vpack.c.b16 %v1970, %v1966
    %v2407 = vpack.c.b16 %v1971, %v1967
    %v2408 = vpack.c.b16 %v1976, %v1972
    %v2409 = vpack.c.b16 %v1977, %v1973
    %v2410 = vpack.c.b16 %v1978, %v1974
    %v2411 = vpack.c.b16 %v1979, %v1975
    %v2412 = vpack.c.b16 %v1984, %v1980
    %v2413 = vpack.c.b16 %v1985, %v1981
    %v2414 = vpack.c.b16 %v1986, %v1982
    %v2415 = vpack.c.b16 %v1987, %v1983
    %v2416 = vpack.c.b16 %v1992, %v1988
    %v2417 = vpack.c.b16 %v1993, %v1989
    %v2418 = vpack.c.b16 %v1994, %v1990
    %v2419 = vpack.c.b16 %v1995, %v1991
    %v2420 = vpack.c.b16 %v2000, %v1996
    %v2421 = vpack.c.b16 %v2001, %v1997
    %v2422 = vpack.c.b16 %v2002, %v1998
    %v2423 = vpack.c.b16 %v2003, %v1999
    %v2424 = vpack.c.b16 %v2008, %v2004
    %v2425 = vpack.c.b16 %v2009, %v2005
    %v2426 = vpack.c.b16 %v2010, %v2006
    %v2427 = vpack.c.b16 %v2011, %v2007
    %v2428 = vpack.c.b16 %v2016, %v2012
    %v2429 = vpack.c.b16 %v2017, %v2013
    %v2430 = vpack.c.b16 %v2018, %v2014
    %v2431 = vpack.c.b16 %v2019, %v2015
    %v2432 = vpack.c.b16 %v2024, %v2020
    %v2433 = vpack.c.b16 %v2025, %v2021
    %v2434 = vpack.c.b16 %v2026, %v2022
    %v2435 = vpack.c.b16 %v2027, %v2023
    %v2436 = vpack.c.b16 %v2032, %v2028
    %v2437 = vpack.c.b16 %v2033, %v2029
    %v2438 = vpack.c.b16 %v2034, %v2030
    %v2439 = vpack.c.b16 %v2035, %v2031
    %v2440 = vpack.c.b16 %v2040, %v2036
    %v2441 = vpack.c.b16 %v2041, %v2037
    %v2442 = vpack.c.b16 %v2042, %v2038
    %v2443 = vpack.c.b16 %v2043, %v2039
    %v2444 = vpack.c.b16 %v2048, %v2044
    %v2445 = vpack.c.b16 %v2049, %v2045
    %v2446 = vpack.c.b16 %v2050, %v2046
    %v2447 = vpack.c.b16 %v2051, %v2047
    %v2448 = vpack.c.b16 %v2056, %v2052
    %v2449 = vpack.c.b16 %v2057, %v2053
    %v2450 = vpack.c.b16 %v2058, %v2054
    %v2451 = vpack.c.b16 %v2059, %v2055
    %v2452 = vpack.c.b16 %v2064, %v2060
    %v2453 = vpack.c.b16 %v2065, %v2061
    %v2454 = vpack.c.b16 %v2066, %v2062
    %v2455 = vpack.c.b16 %v2067, %v2063
    %v2456 = vpack.c.b16 %v2072, %v2068
    %v2457 = vpack.c.b16 %v2073, %v2069
    %v2458 = vpack.c.b16 %v2074, %v2070
    %v2459 = vpack.c.b16 %v2075, %v2071
    %v2460 = vpack.c.b16 %v2080, %v2076
    %v2461 = vpack.c.b16 %v2081, %v2077
    %v2462 = vpack.c.b16 %v2082, %v2078
    %v2463 = vpack.c.b16 %v2083, %v2079
    %v2464 = vpack.c.b16 %v2088, %v2084
    %v2465 = vpack.c.b16 %v2089, %v2085
    %v2466 = vpack.c.b16 %v2090, %v2086
    %v2467 = vpack.c.b16 %v2091, %v2087
    %v2468 = vpack.c.b16 %v2096, %v2092
    %v2469 = vpack.c.b16 %v2097, %v2093
    %v2470 = vpack.c.b16 %v2098, %v2094
    %v2471 = vpack.c.b16 %v2099, %v2095
    %v2472 = vpack.c.b16 %v2104, %v2100
    %v2473 = vpack.c.b16 %v2105, %v2101
    %v2474 = vpack.c.b16 %v2106, %v2102
    %v2475 = vpack.c.b16 %v2107, %v2103
    %v2476 = vpack.c.b16 %v2112, %v2108
    %v2477 = vpack.c.b16 %v2113, %v2109
    %v2478 = vpack.c.b16 %v2114, %v2110
    %v2479 = vpack.c.b16 %v2115, %v2111
    %v2480 = vpack.c.b16 %v2120, %v2116
    %v2481 = vpack.c.b16 %v2121, %v2117
    %v2482 = vpack.c.b16 %v2122, %v2118
    %v2483 = vpack.c.b16 %v2123, %v2119
    %v2484 = vpack.c.b16 %v2128, %v2124
    %v2485 = vpack.c.b16 %v2129, %v2125
    %v2486 = vpack.c.b16 %v2130, %v2126
    %v2487 = vpack.c.b16 %v2131, %v2127
    %v2488 = vpack.c.b16 %v2136, %v2132
    %v2489 = vpack.c.b16 %v2137, %v2133
    %v2490 = vpack.c.b16 %v2138, %v2134
    %v2491 = vpack.c.b16 %v2139, %v2135
    %v2492 = vpack.c.b16 %v2144, %v2140
    %v2493 = vpack.c.b16 %v2145, %v2141
    %v2494 = vpack.c.b16 %v2146, %v2142
    %v2495 = vpack.c.b16 %v2147, %v2143
    %v2496 = vpack.c.b16 %v2152, %v2148
    %v2497 = vpack.c.b16 %v2153, %v2149
    %v2498 = vpack.c.b16 %v2154, %v2150
    %v2499 = vpack.c.b16 %v2155, %v2151
    %v2500 = vpack.c.b16 %v2160, %v2156
    %v2501 = vpack.c.b16 %v2161, %v2157
    %v2502 = vpack.c.b16 %v2162, %v2158
    %v2503 = vpack.c.b16 %v2163, %v2159
    %v2504 = vpack.c.b16 %v2168, %v2164
    %v2505 = vpack.c.b16 %v2169, %v2165
    %v2506 = vpack.c.b16 %v2170, %v2166
    %v2507 = vpack.c.b16 %v2171, %v2167
    %v2508 = vpack.c.b16 %v2176, %v2172
    %v2509 = vpack.c.b16 %v2177, %v2173
    %v2510 = vpack.c.b16 %v2178, %v2174
    %v2511 = vpack.c.b16 %v2179, %v2175
    %v2512 = vpack.c.b16 %v2184, %v2180
    %v2513 = vpack.c.b16 %v2185, %v2181
    %v2514 = vpack.c.b16 %v2186, %v2182
    %v2515 = vpack.c.b16 %v2187, %v2183
    %v2516 = vpack.c.b16 %v2192, %v2188
    %v2517 = vpack.c.b16 %v2193, %v2189
    %v2518 = vpack.c.b16 %v2194, %v2190
    %v2519 = vpack.c.b16 %v2195, %v2191
    %v2520 = vpack.c.b16 %v2200, %v2196
    %v2521 = vpack.c.b16 %v2201, %v2197
    %v2522 = vpack.c.b16 %v2202, %v2198
    %v2523 = vpack.c.b16 %v2203, %v2199
    %v2524 = vpack.c.b16 %v2208, %v2204
    %v2525 = vpack.c.b16 %v2209, %v2205
    %v2526 = vpack.c.b16 %v2210, %v2206
    %v2527 = vpack.c.b16 %v2211, %v2207
    %v2528 = vpack.c.b16 %v2216, %v2212
    %v2529 = vpack.c.b16 %v2217, %v2213
    %v2530 = vpack.c.b16 %v2218, %v2214
    %v2531 = vpack.c.b16 %v2219, %v2215
    %v2532 = vpack.c.b16 %v2224, %v2220
    %v2533 = vpack.c.b16 %v2225, %v2221
    %v2534 = vpack.c.b16 %v2226, %v2222
    %v2535 = vpack.c.b16 %v2227, %v2223
    %v2536 = vpack.c.b16 %v2232, %v2228
    %v2537 = vpack.c.b16 %v2233, %v2229
    %v2538 = vpack.c.b16 %v2234, %v2230
    %v2539 = vpack.c.b16 %v2235, %v2231
    %v2540 = vpack.c.b16 %v2240, %v2236
    %v2541 = vpack.c.b16 %v2241, %v2237
    %v2542 = vpack.c.b16 %v2242, %v2238
    %v2543 = vpack.c.b16 %v2243, %v2239
    %v2544 = vpack.c.b16 %v2248, %v2244
    %v2545 = vpack.c.b16 %v2249, %v2245
    %v2546 = vpack.c.b16 %v2250, %v2246
    %v2547 = vpack.c.b16 %v2251, %v2247
    %v2548 = vpack.c.b16 %v2256, %v2252
    %v2549 = vpack.c.b16 %v2257, %v2253
    %v2550 = vpack.c.b16 %v2258, %v2254
    %v2551 = vpack.c.b16 %v2259, %v2255
    %v2552 = vpack.c.b16 %v2264, %v2260
    %v2553 = vpack.c.b16 %v2265, %v2261
    %v2554 = vpack.c.b16 %v2266, %v2262
    %v2555 = vpack.c.b16 %v2267, %v2263
    %v2556 = vpack.c.b16 %v2272, %v2268
    %v2557 = vpack.c.b16 %v2273, %v2269
    %v2558 = vpack.c.b16 %v2274, %v2270
    %v2559 = vpack.c.b16 %v2275, %v2271
    %v2560 = vpack.c.b16 %v2280, %v2276
    %v2561 = vpack.c.b16 %v2281, %v2277
    %v2562 = vpack.c.b16 %v2282, %v2278
    %v2563 = vpack.c.b16 %v2283, %v2279
    %v2564 = vpack.c.b16 %v2288, %v2284
    %v2565 = vpack.c.b16 %v2289, %v2285
    %v2566 = vpack.c.b16 %v2290, %v2286
    %v2567 = vpack.c.b16 %v2291, %v2287
    %v2568 = vpack.c.b16 %v2296, %v2292
    %v2569 = vpack.c.b16 %v2297, %v2293
    %v2570 = vpack.c.b16 %v2298, %v2294
    %v2571 = vpack.c.b16 %v2299, %v2295
    %v2572 = vpack.c.b16 %v2304, %v2300
    %v2573 = vpack.c.b16 %v2305, %v2301
    %v2574 = vpack.c.b16 %v2306, %v2302
    %v2575 = vpack.c.b16 %v2307, %v2303
    %v2576 = vpack.c.b16 %v2312, %v2308
    %v2577 = vpack.c.b16 %v2313, %v2309
    %v2578 = vpack.c.b16 %v2314, %v2310
    %v2579 = vpack.c.b16 %v2315, %v2311
    %v2580 = vpack.c.b16 %v2320, %v2316
    %v2581 = vpack.c.b16 %v2321, %v2317
    %v2582 = vpack.c.b16 %v2322, %v2318
    %v2583 = vpack.c.b16 %v2323, %v2319
    %v2584 = vpack.c.b16 %v2328, %v2324
    %v2585 = vpack.c.b16 %v2329, %v2325
    %v2586 = vpack.c.b16 %v2330, %v2326
    %v2587 = vpack.c.b16 %v2331, %v2327
    %2844 = vmatprep.subr.bf16.mxu0 %v2333
    %2845 = vmatpush1.bf16.msra.mxu0 %v2332
    %2846 = vmatprep.subr.bf16.mxu0 %v2337
    %2847 = vmatpush1.bf16.msra.mxu0 %v2336
    %2848 = vmatprep.subr.bf16.mxu0 %v2341
    %2849 = vmatpush1.bf16.msra.mxu0 %v2340
    %2850 = vmatprep.subr.bf16.mxu0 %v2345
    %2851 = vmatpush1.bf16.msra.mxu0 %v2344
    %2852 = vmatprep.subr.bf16.mxu0 %v2349
    %2853 = vmatpush1.bf16.msra.mxu0 %v2348
    %2854 = vmatprep.subr.bf16.mxu0 %v2353
    %2855 = vmatpush1.bf16.msra.mxu0 %v2352
    %2856 = vmatprep.subr.bf16.mxu0 %v2357
    %2857 = vmatpush1.bf16.msra.mxu0 %v2356
    %2858 = vmatprep.subr.bf16.mxu0 %v2361
    %2859 = vmatpush1.bf16.msra.mxu0 %v2360
    %2860 = vmatprep.subr.bf16.mxu0 %v2365
    %2861 = vmatpush1.bf16.msra.mxu0 %v2364
    %2862 = vmatprep.subr.bf16.mxu0 %v2369
    %2863 = vmatpush1.bf16.msra.mxu0 %v2368
    %2864 = vmatprep.subr.bf16.mxu0 %v2373
    %2865 = vmatpush1.bf16.msra.mxu0 %v2372
    %2866 = vmatprep.subr.bf16.mxu0 %v2377
    %2867 = vmatpush1.bf16.msra.mxu0 %v2376
    %2868 = vmatprep.subr.bf16.mxu0 %v2381
    %2869 = vmatpush1.bf16.msra.mxu0 %v2380
    %2870 = vmatprep.subr.bf16.mxu0 %v2385
    %2871 = vmatpush1.bf16.msra.mxu0 %v2384
    %2872 = vmatprep.subr.bf16.mxu0 %v2389
    %2873 = vmatpush1.bf16.msra.mxu0 %v2388
    %2874 = vmatprep.subr.bf16.mxu0 %v2393
    %2875 = vmatpush1.bf16.msra.mxu0 %v2392
    %2876 = vmatprep.mubr.bf16.mxu0 %v1278
    %2877 = vmatmul.mubr.bf16.gmra.mrb[0].mxu0 %v1277
    %v2878 = vpop.f32.mrb[0].mxu0
    %v2879 = vadd.f32 %v1547, %v2878
    %v2880 = vpop.f32.mrb[0].mxu0
    %v2881 = vadd.f32 %v1551, %v2880
    %v2882 = vpop.f32.mrb[0].mxu0
    %v2883 = vpop.f32.mrb[0].mxu0
    %2884 = vdwg.mxu0
    %2885 = vmatprep.subr.bf16.mxu0 %v2397
    %2886 = vmatpush1.bf16.msra.mxu0 %v2396
    %2887 = vmatprep.subr.bf16.mxu0 %v2401
    %2888 = vmatpush1.bf16.msra.mxu0 %v2400
    %2889 = vmatprep.subr.bf16.mxu0 %v2405
    %2890 = vmatpush1.bf16.msra.mxu0 %v2404
    %2891 = vmatprep.subr.bf16.mxu0 %v2409
    %2892 = vmatpush1.bf16.msra.mxu0 %v2408
    %2893 = vmatprep.subr.bf16.mxu0 %v2413
    %2894 = vmatpush1.bf16.msra.mxu0 %v2412
    %2895 = vmatprep.subr.bf16.mxu0 %v2417
    %2896 = vmatpush1.bf16.msra.mxu0 %v2416
    %2897 = vmatprep.subr.bf16.mxu0 %v2421
    %2898 = vmatpush1.bf16.msra.mxu0 %v2420
    %2899 = vmatprep.subr.bf16.mxu0 %v2425
    %2900 = vmatpush1.bf16.msra.mxu0 %v2424
    %2901 = vmatprep.subr.bf16.mxu0 %v2429
    %2902 = vmatpush1.bf16.msra.mxu0 %v2428
    %2903 = vmatprep.subr.bf16.mxu0 %v2433
    %2904 = vmatpush1.bf16.msra.mxu0 %v2432
    %2905 = vmatprep.subr.bf16.mxu0 %v2437
    %2906 = vmatpush1.bf16.msra.mxu0 %v2436
    %2907 = vmatprep.subr.bf16.mxu0 %v2441
    %2908 = vmatpush1.bf16.msra.mxu0 %v2440
    %2909 = vmatprep.subr.bf16.mxu0 %v2445
    %2910 = vmatpush1.bf16.msra.mxu0 %v2444
    %2911 = vmatprep.subr.bf16.mxu0 %v2449
    %2912 = vmatpush1.bf16.msra.mxu0 %v2448
    %2913 = vmatprep.subr.bf16.mxu0 %v2453
    %2914 = vmatpush1.bf16.msra.mxu0 %v2452
    %2915 = vmatprep.subr.bf16.mxu0 %v2457
    %2916 = vmatpush1.bf16.msra.mxu0 %v2456
    %2917 = vmatprep.mubr.bf16.mxu0 %v1280
    %2918 = vmatmul.mubr.bf16.gmra.mrb[0].mxu0 %v1279
    %v2919 = vpop.f32.mrb[0].mxu0
    %v2920 = vadd.f32 %v2879, %v2919
    %v2921 = vpop.f32.mrb[0].mxu0
    %v2922 = vadd.f32 %v2881, %v2921
    %v2923 = vpop.f32.mrb[0].mxu0
    %v2924 = vpop.f32.mrb[0].mxu0
    %2925 = vdwg.mxu0
    %2926 = vmatprep.subr.bf16.mxu0 %v2461
    %2927 = vmatpush1.bf16.msra.mxu0 %v2460
    %2928 = vmatprep.subr.bf16.mxu0 %v2465
    %2929 = vmatpush1.bf16.msra.mxu0 %v2464
    %2930 = vmatprep.subr.bf16.mxu0 %v2469
    %2931 = vmatpush1.bf16.msra.mxu0 %v2468
    %2932 = vmatprep.subr.bf16.mxu0 %v2473
    %2933 = vmatpush1.bf16.msra.mxu0 %v2472
    %2934 = vmatprep.subr.bf16.mxu0 %v2477
    %2935 = vmatpush1.bf16.msra.mxu0 %v2476
    %2936 = vmatprep.subr.bf16.mxu0 %v2481
    %2937 = vmatpush1.bf16.msra.mxu0 %v2480
    %2938 = vmatprep.subr.bf16.mxu0 %v2485
    %2939 = vmatpush1.bf16.msra.mxu0 %v2484
    %2940 = vmatprep.subr.bf16.mxu0 %v2489
    %2941 = vmatpush1.bf16.msra.mxu0 %v2488
    %2942 = vmatprep.subr.bf16.mxu0 %v2493
    %2943 = vmatpush1.bf16.msra.mxu0 %v2492
    %2944 = vmatprep.subr.bf16.mxu0 %v2497
    %2945 = vmatpush1.bf16.msra.mxu0 %v2496
    %2946 = vmatprep.subr.bf16.mxu0 %v2501
    %2947 = vmatpush1.bf16.msra.mxu0 %v2500
    %2948 = vmatprep.subr.bf16.mxu0 %v2505
    %2949 = vmatpush1.bf16.msra.mxu0 %v2504
    %2950 = vmatprep.subr.bf16.mxu0 %v2509
    %2951 = vmatpush1.bf16.msra.mxu0 %v2508
    %2952 = vmatprep.subr.bf16.mxu0 %v2513
    %2953 = vmatpush1.bf16.msra.mxu0 %v2512
    %2954 = vmatprep.subr.bf16.mxu0 %v2517
    %2955 = vmatpush1.bf16.msra.mxu0 %v2516
    %2956 = vmatprep.subr.bf16.mxu0 %v2521
    %2957 = vmatpush1.bf16.msra.mxu0 %v2520
    %2958 = vmatprep.mubr.bf16.mxu0 %v1282
    %2959 = vmatmul.mubr.bf16.gmra.mrb[0].mxu0 %v1281
    %v2960 = vpop.f32.mrb[0].mxu0
    %v2961 = vadd.f32 %v2920, %v2960
    %v2962 = vpop.f32.mrb[0].mxu0
    %v2963 = vadd.f32 %v2922, %v2962
    %v2964 = vpop.f32.mrb[0].mxu0
    %v2965 = vpop.f32.mrb[0].mxu0
    %2966 = vdwg.mxu0
    %2967 = vmatprep.subr.bf16.mxu0 %v2525
    %2968 = vmatpush1.bf16.msra.mxu0 %v2524
    %2969 = vmatprep.subr.bf16.mxu0 %v2529
    %2970 = vmatpush1.bf16.msra.mxu0 %v2528
    %2971 = vmatprep.subr.bf16.mxu0 %v2533
    %2972 = vmatpush1.bf16.msra.mxu0 %v2532
    %2973 = vmatprep.subr.bf16.mxu0 %v2537
    %2974 = vmatpush1.bf16.msra.mxu0 %v2536
    %2975 = vmatprep.subr.bf16.mxu0 %v2541
    %2976 = vmatpush1.bf16.msra.mxu0 %v2540
    %2977 = vmatprep.subr.bf16.mxu0 %v2545
    %2978 = vmatpush1.bf16.msra.mxu0 %v2544
    %2979 = vmatprep.subr.bf16.mxu0 %v2549
    %2980 = vmatpush1.bf16.msra.mxu0 %v2548
    %2981 = vmatprep.subr.bf16.mxu0 %v2553
    %2982 = vmatpush1.bf16.msra.mxu0 %v2552
    %2983 = vmatprep.subr.bf16.mxu0 %v2557
    %2984 = vmatpush1.bf16.msra.mxu0 %v2556
    %2985 = vmatprep.subr.bf16.mxu0 %v2561
    %2986 = vmatpush1.bf16.msra.mxu0 %v2560
    %2987 = vmatprep.subr.bf16.mxu0 %v2565
    %2988 = vmatpush1.bf16.msra.mxu0 %v2564
    %2989 = vmatprep.subr.bf16.mxu0 %v2569
    %2990 = vmatpush1.bf16.msra.mxu0 %v2568
    %2991 = vmatprep.subr.bf16.mxu0 %v2573
    %2992 = vmatpush1.bf16.msra.mxu0 %v2572
    %2993 = vmatprep.subr.bf16.mxu0 %v2577
    %2994 = vmatpush1.bf16.msra.mxu0 %v2576
    %2995 = vmatprep.subr.bf16.mxu0 %v2581
    %2996 = vmatpush1.bf16.msra.mxu0 %v2580
    %2997 = vmatprep.subr.bf16.mxu0 %v2585
    %2998 = vmatpush1.bf16.msra.mxu0 %v2584
    %2999 = vmatprep.mubr.bf16.mxu0 %v1284
    %3000 = vmatmul.mubr.bf16.gmra.mrb[0].mxu0 %v1283
    %v3001 = vpop.f32.mrb[0].mxu0
    %v3002 = vadd.f32 %v2961, %v3001
    %v3003 = vpop.f32.mrb[0].mxu0
    %v3004 = vadd.f32 %v2963, %v3003
    %v3005 = vpop.f32.mrb[0].mxu0
    %v3006 = vpop.f32.mrb[0].mxu0
    %3007 = vdwg.mxu0
    %3008 = vmatprep.subr.bf16.mxu0 %v2335
    %3009 = vmatpush1.bf16.msra.mxu0 %v2334
    %3010 = vmatprep.subr.bf16.mxu0 %v2339
    %3011 = vmatpush1.bf16.msra.mxu0 %v2338
    %3012 = vmatprep.subr.bf16.mxu0 %v2343
    %3013 = vmatpush1.bf16.msra.mxu0 %v2342
    %3014 = vmatprep.subr.bf16.mxu0 %v2347
    %3015 = vmatpush1.bf16.msra.mxu0 %v2346
    %3016 = vmatprep.subr.bf16.mxu0 %v2351
    %3017 = vmatpush1.bf16.msra.mxu0 %v2350
    %3018 = vmatprep.subr.bf16.mxu0 %v2355
    %3019 = vmatpush1.bf16.msra.mxu0 %v2354
    %3020 = vmatprep.subr.bf16.mxu0 %v2359
    %3021 = vmatpush1.bf16.msra.mxu0 %v2358
    %3022 = vmatprep.subr.bf16.mxu0 %v2363
    %3023 = vmatpush1.bf16.msra.mxu0 %v2362
    %3024 = vmatprep.subr.bf16.mxu0 %v2367
    %3025 = vmatpush1.bf16.msra.mxu0 %v2366
    %3026 = vmatprep.subr.bf16.mxu0 %v2371
    %3027 = vmatpush1.bf16.msra.mxu0 %v2370
    %3028 = vmatprep.subr.bf16.mxu0 %v2375
    %3029 = vmatpush1.bf16.msra.mxu0 %v2374
    %3030 = vmatprep.subr.bf16.mxu0 %v2379
    %3031 = vmatpush1.bf16.msra.mxu0 %v2378
    %3032 = vmatprep.subr.bf16.mxu0 %v2383
    %3033 = vmatpush1.bf16.msra.mxu0 %v2382
    %3034 = vmatprep.subr.bf16.mxu0 %v2387
    %3035 = vmatpush1.bf16.msra.mxu0 %v2386
    %3036 = vmatprep.subr.bf16.mxu0 %v2391
    %3037 = vmatpush1.bf16.msra.mxu0 %v2390
    %3038 = vmatprep.subr.bf16.mxu0 %v2395
    %3039 = vmatpush1.bf16.msra.mxu0 %v2394
    %3040 = vmatprep.mubr.bf16.mxu0 %v1278
    %3041 = vmatmul.mubr.bf16.gmra.mrb[0].mxu0 %v1277
    %v3042 = vpop.f32.mrb[0].mxu0
    %v3043 = vadd.f32 %v1555, %v3042
    %v3044 = vpop.f32.mrb[0].mxu0
    %v3045 = vadd.f32 %v1559, %v3044
    %v3046 = vpop.f32.mrb[0].mxu0
    %v3047 = vpop.f32.mrb[0].mxu0
    %3048 = vdwg.mxu0
    %3049 = vmatprep.subr.bf16.mxu0 %v2399
    %3050 = vmatpush1.bf16.msra.mxu0 %v2398
    %3051 = vmatprep.subr.bf16.mxu0 %v2403
    %3052 = vmatpush1.bf16.msra.mxu0 %v2402
    %3053 = vmatprep.subr.bf16.mxu0 %v2407
    %3054 = vmatpush1.bf16.msra.mxu0 %v2406
    %3055 = vmatprep.subr.bf16.mxu0 %v2411
    %3056 = vmatpush1.bf16.msra.mxu0 %v2410
    %3057 = vmatprep.subr.bf16.mxu0 %v2415
    %3058 = vmatpush1.bf16.msra.mxu0 %v2414
    %3059 = vmatprep.subr.bf16.mxu0 %v2419
    %3060 = vmatpush1.bf16.msra.mxu0 %v2418
    %3061 = vmatprep.subr.bf16.mxu0 %v2423
    %3062 = vmatpush1.bf16.msra.mxu0 %v2422
    %3063 = vmatprep.subr.bf16.mxu0 %v2427
    %3064 = vmatpush1.bf16.msra.mxu0 %v2426
    %3065 = vmatprep.subr.bf16.mxu0 %v2431
    %3066 = vmatpush1.bf16.msra.mxu0 %v2430
    %3067 = vmatprep.subr.bf16.mxu0 %v2435
    %3068 = vmatpush1.bf16.msra.mxu0 %v2434
    %3069 = vmatprep.subr.bf16.mxu0 %v2439
    %3070 = vmatpush1.bf16.msra.mxu0 %v2438
    %3071 = vmatprep.subr.bf16.mxu0 %v2443
    %3072 = vmatpush1.bf16.msra.mxu0 %v2442
    %3073 = vmatprep.subr.bf16.mxu0 %v2447
    %3074 = vmatpush1.bf16.msra.mxu0 %v2446
    %3075 = vmatprep.subr.bf16.mxu0 %v2451
    %3076 = vmatpush1.bf16.msra.mxu0 %v2450
    %3077 = vmatprep.subr.bf16.mxu0 %v2455
    %3078 = vmatpush1.bf16.msra.mxu0 %v2454
    %3079 = vmatprep.subr.bf16.mxu0 %v2459
    %3080 = vmatpush1.bf16.msra.mxu0 %v2458
    %3081 = vmatprep.mubr.bf16.mxu0 %v1280
    %3082 = vmatmul.mubr.bf16.gmra.mrb[0].mxu0 %v1279
    %v3083 = vpop.f32.mrb[0].mxu0
    %v3084 = vadd.f32 %v3043, %v3083
    %v3085 = vpop.f32.mrb[0].mxu0
    %v3086 = vadd.f32 %v3045, %v3085
    %v3087 = vpop.f32.mrb[0].mxu0
    %v3088 = vpop.f32.mrb[0].mxu0
    %3089 = vdwg.mxu0
    %3090 = vmatprep.subr.bf16.mxu0 %v2463
    %3091 = vmatpush1.bf16.msra.mxu0 %v2462
    %3092 = vmatprep.subr.bf16.mxu0 %v2467
    %3093 = vmatpush1.bf16.msra.mxu0 %v2466
    %3094 = vmatprep.subr.bf16.mxu0 %v2471
    %3095 = vmatpush1.bf16.msra.mxu0 %v2470
    %3096 = vmatprep.subr.bf16.mxu0 %v2475
    %3097 = vmatpush1.bf16.msra.mxu0 %v2474
    %3098 = vmatprep.subr.bf16.mxu0 %v2479
    %3099 = vmatpush1.bf16.msra.mxu0 %v2478
    %3100 = vmatprep.subr.bf16.mxu0 %v2483
    %3101 = vmatpush1.bf16.msra.mxu0 %v2482
    %3102 = vmatprep.subr.bf16.mxu0 %v2487
    %3103 = vmatpush1.bf16.msra.mxu0 %v2486
    %3104 = vmatprep.subr.bf16.mxu0 %v2491
    %3105 = vmatpush1.bf16.msra.mxu0 %v2490
    %3106 = vmatprep.subr.bf16.mxu0 %v2495
    %3107 = vmatpush1.bf16.msra.mxu0 %v2494
    %3108 = vmatprep.subr.bf16.mxu0 %v2499
    %3109 = vmatpush1.bf16.msra.mxu0 %v2498
    %3110 = vmatprep.subr.bf16.mxu0 %v2503
    %3111 = vmatpush1.bf16.msra.mxu0 %v2502
    %3112 = vmatprep.subr.bf16.mxu0 %v2507
    %3113 = vmatpush1.bf16.msra.mxu0 %v2506
    %3114 = vmatprep.subr.bf16.mxu0 %v2511
    %3115 = vmatpush1.bf16.msra.mxu0 %v2510
    %3116 = vmatprep.subr.bf16.mxu0 %v2515
    %3117 = vmatpush1.bf16.msra.mxu0 %v2514
    %3118 = vmatprep.subr.bf16.mxu0 %v2519
    %3119 = vmatpush1.bf16.msra.mxu0 %v2518
    %3120 = vmatprep.subr.bf16.mxu0 %v2523
    %3121 = vmatpush1.bf16.msra.mxu0 %v2522
    %3122 = vmatprep.mubr.bf16.mxu0 %v1282
    %3123 = vmatmul.mubr.bf16.gmra.mrb[0].mxu0 %v1281
    %v3124 = vpop.f32.mrb[0].mxu0
    %v3125 = vadd.f32 %v3084, %v3124
    %v3126 = vpop.f32.mrb[0].mxu0
    %v3127 = vadd.f32 %v3086, %v3126
    %v3128 = vpop.f32.mrb[0].mxu0
    %v3129 = vpop.f32.mrb[0].mxu0
    %3130 = vdwg.mxu0
    %3131 = vmatprep.subr.bf16.mxu0 %v2527
    %3132 = vmatpush1.bf16.msra.mxu0 %v2526
    %3133 = vmatprep.subr.bf16.mxu0 %v2531
    %3134 = vmatpush1.bf16.msra.mxu0 %v2530
    %3135 = vmatprep.subr.bf16.mxu0 %v2535
    %3136 = vmatpush1.bf16.msra.mxu0 %v2534
    %3137 = vmatprep.subr.bf16.mxu0 %v2539
    %3138 = vmatpush1.bf16.msra.mxu0 %v2538
    %3139 = vmatprep.subr.bf16.mxu0 %v2543
    %3140 = vmatpush1.bf16.msra.mxu0 %v2542
    %3141 = vmatprep.subr.bf16.mxu0 %v2547
    %3142 = vmatpush1.bf16.msra.mxu0 %v2546
    %3143 = vmatprep.subr.bf16.mxu0 %v2551
    %3144 = vmatpush1.bf16.msra.mxu0 %v2550
    %3145 = vmatprep.subr.bf16.mxu0 %v2555
    %3146 = vmatpush1.bf16.msra.mxu0 %v2554
    %3147 = vmatprep.subr.bf16.mxu0 %v2559
    %3148 = vmatpush1.bf16.msra.mxu0 %v2558
    %3149 = vmatprep.subr.bf16.mxu0 %v2563
    %3150 = vmatpush1.bf16.msra.mxu0 %v2562
    %3151 = vmatprep.subr.bf16.mxu0 %v2567
    %3152 = vmatpush1.bf16.msra.mxu0 %v2566
    %3153 = vmatprep.subr.bf16.mxu0 %v2571
    %3154 = vmatpush1.bf16.msra.mxu0 %v2570
    %3155 = vmatprep.subr.bf16.mxu0 %v2575
    %3156 = vmatpush1.bf16.msra.mxu0 %v2574
    %3157 = vmatprep.subr.bf16.mxu0 %v2579
    %3158 = vmatpush1.bf16.msra.mxu0 %v2578
    %3159 = vmatprep.subr.bf16.mxu0 %v2583
    %3160 = vmatpush1.bf16.msra.mxu0 %v2582
    %3161 = vmatprep.subr.bf16.mxu0 %v2587
    %3162 = vmatpush1.bf16.msra.mxu0 %v2586
    %3163 = vmatprep.mubr.bf16.mxu0 %v1284
    %3164 = vmatmul.mubr.bf16.gmra.mrb[0].mxu0 %v1283
    %v3165 = vpop.f32.mrb[0].mxu0
    %v3166 = vadd.f32 %v3125, %v3165
    %v3167 = vpop.f32.mrb[0].mxu0
    %v3168 = vadd.f32 %v3127, %v3167
    %v3169 = vpop.f32.mrb[0].mxu0
    %v3170 = vpop.f32.mrb[0].mxu0
    %3171 = vdwg.mxu0
    %v3172 = vmax.f32 %v3002, 0.0
    %v3173 = vmax.f32 %v3004, 0.0
    %v3174 = vmax.f32 %v3166, 0.0
    %v3175 = vmax.f32 %v3168, 0.0
    %v3176 = vld [vmem:[%s5] sm:$0xf]
    %v3178 = vlaneseq
    %v3179 = vshrl.u32 %v3178, 7
    %v3180 = vsub.s32 0, %v3179
    %v3181 = vrot.slane %v3176, %v3180
    %v3182 = vlaneseq
    %v3183 = vshrl.u32 %v3182, 7
    %v3184 = vsub.s32 1, %v3183
    %v3185 = vrot.slane %v3176, %v3184
    %v3186 = vlaneseq
    %v3187 = vshrl.u32 %v3186, 7
    %v3188 = vsub.s32 2, %v3187
    %v3189 = vrot.slane %v3176, %v3188
    %v3190 = vlaneseq
    %v3191 = vshrl.u32 %v3190, 7
    %v3192 = vsub.s32 3, %v3191
    %v3193 = vrot.slane %v3176, %v3192
    %v3198 = vmul.f32 %v3172, %v3181
    %v3199 = vmul.f32 %v3173, %v3185
    %v3200 = vmul.f32 %v3174, %v3189
    %v3201 = vmul.f32 %v3175, %v3193
    %v3202 = vadd.f32 %v3198, %v3199
    %v3203 = vadd.f32 %v3202, %v3200
    %v3204 = vadd.f32 %v3203, %v3201
    %3205 = vadd.xlane.f32.xlu0 %v3204
    %v3206 = vpop.xlane.xlu0 %3205
    %v3207 = vld [vmem:[#allocation10 + $0x2] sm:$0x1]
    %v3208 = vlaneseq
    %v3209 = vshrl.u32 %v3208, 7
    %v3210 = vsub.s32 0, %v3209
    %v3211 = vrot.slane %v3207, %v3210
    %v3212 = vadd.f32 %v3206, %v3211
    %vm3213 = vcmask 7168
    %3214 = vst.msk [vmem:[%s8] sm:$0xff] %vm3213, %v3212
    // Predicated region
    $region58: #{tpu_custom_call.1} parent=1 // pred_check
      _
    $region59: #{tpu_custom_call.1} parent=1 // pred_check_branch
      %3216 = sbr.rel (0) target = $region61
    $region60: #{tpu_custom_call.1} parent=1 // pred_region
      _
    $region61: #{tpu_custom_call.1} parent=1 // pred_fallthru
      _
    // Predicated region
    $region62: #{tpu_custom_call.1} parent=1 // pred_check
      _
    $region63: #{tpu_custom_call.1} parent=1 // pred_check_branch
      %3218 = sbr.rel (0) target = $region65
    $region64: #{tpu_custom_call.1} parent=1 // pred_region
      _
    $region65: #{tpu_custom_call.1} parent=1 // pred_fallthru
      _
    %3219 = vsyncpa [#allocation3], 1
    %3220 = vsyncpa [#allocation5], 1
    %3221 = vsyncpa [#allocation8], 1
    %3222 = vsyncpa [#allocation11], 1

</llo_original>
